<compile_context>
chip_gen: v5e
topology: v5e:2x2
jax: 0.10.0
libtpu: 0.0.40
codegen_flags: <defaults>
</compile_context>

<pallas_src>
import jax
import jax.numpy as jnp
from jax.experimental import pallas as pl
from jax.experimental.pallas import tpu as pltpu


def rankgen_score_kernel(x_ref, scale_ref, w_ref, out_ref):
    # x_ref     : (2, TB, H) bf16   stacked [prefix; suffix] masked pooled sums
    # scale_ref : (1, TB)    f32    count_p * count_s  (mean-pool denominators)
    # w_ref     : (H, D)     bf16   projection weight (VMEM-resident, 1 buffer)
    # out_ref   : (1, TB)    f32    score per pair, lane-dense
    two, tb, h = x_ref.shape
    # Layout-free merge of the prefix/suffix axis into the sublane axis so the
    # weight streams through the MXU once per tile, not twice.
    x = x_ref[...].reshape(two * tb, h)
    xw = jnp.dot(x, w_ref[...],
                 preferred_element_type=jnp.float32)      # one MXU pass: (2TB, D)
    pe = xw[:tb]                                          # (TB, D) prefix emb
    se = xw[tb:]                                          # (TB, D) suffix emb
    score = jnp.sum(pe * se, axis=1)                      # XLU lane-reduce, (TB,)
    inv = pl.reciprocal(scale_ref[...], approx=True)      # EUP slot, ~free
    out_ref[...] = score.reshape(1, tb) * inv             # lane-dense, unmasked store


def _arch_defaults():
    """Per-chip (block_b, vmem_limit_bytes) from the perf review."""
    try:
        kind = jax.devices()[0].device_kind.lower()
    except Exception:
        kind = ""
    if "v5 lite" in kind or "v5e" in kind or "v5lite" in kind:
        # v5e: slow MXU already hides per-step overhead; keep tiles small.
        return 128, 48 << 20
    if "v6" in kind:
        # v6e: 128 MiB physical VMEM; big tiles amortize the ~0.35 us/step.
        return 512, 96 << 20
    if "7" in kind:
        # v7x: fast MXU but only 64 MiB physical VMEM; moderate tile + headroom.
        return 256, 44 << 20
    return 256, 64 << 20


def _scorer(Bp, H, D, TB, vmem_limit, single_buffer_weight):
    if single_buffer_weight:
        # Constant index_map -> weight is revisited every grid step; one buffer
        # suffices (drops the dead 2nd buffer: 8 MiB at production H=D=2048).
        w_spec = pl.BlockSpec((H, D), lambda i: (0, 0),
                              pipeline_mode=pl.Buffered(1))
    else:
        w_spec = pl.BlockSpec((H, D), lambda i: (0, 0))
    return pl.pallas_call(
        rankgen_score_kernel,
        out_shape=jax.ShapeDtypeStruct((1, Bp), jnp.float32),
        grid_spec=pltpu.PrefetchScalarGridSpec(
            num_scalar_prefetch=0,
            grid=(Bp // TB,),
            in_specs=[
                # activations: fresh tile per step (double-buffered/pipelined);
                # the batch axis may end in a partial boundary block whose
                # garbage rows only reach discarded output lanes.
                pl.BlockSpec((2, TB, H), lambda i: (0, i, 0)),
                # per-pair normalization scale, lane-dense, padded with 1.0
                pl.BlockSpec((1, TB), lambda i: (0, i)),
                w_spec,
            ],
            out_specs=pl.BlockSpec((1, TB), lambda i: (0, i)),
        ),
        compiler_params=pltpu.CompilerParams(
            dimension_semantics=("parallel",),   # v7x: shard tiles over 2 TCs
            vmem_limit_bytes=vmem_limit,
        ),
    )


def rankgen_score(pooled_sum, pair_scale, w_proj, *, block_b=None,
                  vmem_limit_bytes=None):
    """pooled_sum: (2, B, H) bf16/f32 un-normalized masked sums (0=prefix,
    1=suffix); pair_scale: (B,) = token_count_p * token_count_s; w_proj: (H, D).
    Returns (B,) f32 scores == sum(emb_p * emb_s, axis=1)."""
    _, B, H = pooled_sum.shape
    Hw, D = w_proj.shape
    assert Hw == H

    db, dv = _arch_defaults()
    TB = db if block_b is None else block_b
    assert TB % 128 == 0, "block_b must be lane-aligned (multiple of 128)"
    # Clamp so the batch axis only ever ends in a standard partial boundary
    # block (never a block larger than the array itself).
    if B >= 128:
        TB = min(TB, (B // 128) * 128)
    vmem_limit = dv if vmem_limit_bytes is None else vmem_limit_bytes

    num_tiles = pl.cdiv(B, TB)
    Bp = num_tiles * TB

    # No full-tensor pad/astype HBM round-trips: activations go in unpadded and
    # already bf16; only the tiny (B,) scale vector is padded (value 1.0 so
    # discarded lanes never see a 0 denominator -> no inf/NaN anywhere).
    x = pooled_sum if pooled_sum.dtype == jnp.bfloat16 else pooled_sum.astype(jnp.bfloat16)
    scale = jnp.pad(pair_scale.astype(jnp.float32), (0, Bp - B),
                    constant_values=1.0).reshape(1, Bp)
    w = w_proj if w_proj.dtype == jnp.bfloat16 else w_proj.astype(jnp.bfloat16)

    # TODO(synk): if D or TB grows well beyond 2048/512 (v7x, 64 MiB VMEM), add
    # a second ("arbitrary") grid axis over D-chunks with a (1, TB) f32
    # accumulator to bound the f32 (2TB, D) intermediate and the resident
    # weight slice.
    try:
        out = _scorer(Bp, H, D, TB, vmem_limit, True)(x, scale, w)
    except Exception:
        # TODO(synk): pl.Buffered(1) rejected by this jax/Mosaic build -- fall
        # back to the default double-buffered weight spec (correct, extra VMEM).
        out = _scorer(Bp, H, D, TB, vmem_limit, False)(x, scale, w)
    return out[0, :B]


def synthetic_encoder_pool(input_ids, attention_mask, embed_table):
    """Plain-JAX glue: embedding lookup + masked SUM pooling, emitted directly
    in bf16 so no separate wrapper-side astype copy of the activations exists.
    Returns (bf16 unnormalized_sum, f32 token_count); the mean-pool division is
    folded into the Pallas kernel as one per-score reciprocal multiply."""
    emb = jnp.take(embed_table, input_ids, axis=0)              # (..., S, H)
    mask = attention_mask.astype(jnp.float32)[..., None]        # (..., S, 1)
    summed = jnp.sum(emb * mask, axis=-2).astype(jnp.bfloat16)  # (..., H) bf16
    counts = jnp.maximum(jnp.sum(mask, axis=-2)[..., 0], 1.0)   # (...)
    return summed, counts


def rankgen_forward(prefixes, suffixes, params, *, block_b=None):
    """Mirror of RankGenModel.forward(prefixes, suffixes) -> (B,) scores."""
    embed_table, w_proj = params["embed_table"], params["w_proj"]
    ids = jnp.stack([prefixes["input_ids"], suffixes["input_ids"]], axis=0)
    mask = jnp.stack([prefixes["attention_mask"],
                      suffixes["attention_mask"]], axis=0)
    pooled_sum, counts = synthetic_encoder_pool(ids, mask, embed_table)  # (2,B,H),(2,B)
    pair_scale = counts[0] * counts[1]                                   # (B,)
    return rankgen_score(pooled_sum, pair_scale, w_proj, block_b=block_b)


if __name__ == "__main__":
    # small but lane-aligned synthetic setup; B=200 exercises 2 batch tiles
    # (grid=(2,)) plus the partial-boundary-block path with TB=128.
    B, S, VOCAB, H, D = 200, 8, 64, 128, 128

    key = jax.random.PRNGKey(0)
    k_emb, k_w, k_pid, k_sid, k_plen, k_slen = jax.random.split(key, 6)

    params = {
        "embed_table": jax.random.normal(k_emb, (VOCAB, H), jnp.float32) * 0.1,
        "w_proj": jax.random.normal(k_w, (H, D), jnp.float32) * 0.1,
    }

    def make_batch(k_ids, k_len):
        ids = jax.random.randint(k_ids, (B, S), 0, VOCAB, dtype=jnp.int32)
        lens = jax.random.randint(k_len, (B,), 3, S + 1, dtype=jnp.int32)
        mask = (jnp.arange(S)[None, :] < lens[:, None]).astype(jnp.int32)
        return {"input_ids": ids, "attention_mask": mask}

    prefixes = make_batch(k_pid, k_plen)
    suffixes = make_batch(k_sid, k_slen)

    # Reference: same math in plain JAX (identical bf16 quantization, f32
    # accumulation, exact division) -- matches the kernel up to MXU accumulation
    # order and the EUP approximate reciprocal.
    ids = jnp.stack([prefixes["input_ids"], suffixes["input_ids"]], axis=0)
    mask = jnp.stack([prefixes["attention_mask"],
                      suffixes["attention_mask"]], axis=0)
    pooled_sum, counts = synthetic_encoder_pool(ids, mask, params["embed_table"])
    xb = pooled_sum.astype(jnp.float32)
    wb = params["w_proj"].astype(jnp.bfloat16).astype(jnp.float32)
    ref = jnp.sum((xb[0] @ wb) * (xb[1] @ wb), axis=1) / (counts[0] * counts[1])

    # 1) small tile: two batch tiles + partial boundary block.
    s128 = rankgen_forward(prefixes, suffixes, params, block_b=128)
    s128 = jax.block_until_ready(s128)
    assert s128.shape == (B,)
    assert jnp.allclose(s128, ref, rtol=2e-2, atol=2e-3), (
        float(jnp.max(jnp.abs(s128 - ref))))

    # 2) architecture-default tile / vmem limit (clamped to the batch).
    sdef = rankgen_forward(prefixes, suffixes, params)
    sdef = jax.block_until_ready(sdef)
    assert sdef.shape == (B,)
    assert jnp.allclose(sdef, ref, rtol=2e-2, atol=2e-3), (
        float(jnp.max(jnp.abs(sdef - ref))))

    print("KERNEL_OK")
</pallas_src>

<mosaic_0001>
module attributes {stable_mosaic.version = 11 : i64} {
  func.func @rankgen_score_kernel(%arg0: i32, %arg1: memref<2x128x128xbf16, #tpu.memory_space<vmem>>, %arg2: memref<1x128xf32, #tpu.memory_space<vmem>>, %arg3: memref<128x128xbf16, #tpu.memory_space<vmem>>, %arg4: memref<1x128xf32, #tpu.memory_space<vmem>>) attributes {dimension_semantics = [#tpu.dimension_semantics<parallel>], iteration_bounds = array<i64: 2>, scalar_prefetch = 0 : i64, scratch_operands = 0 : i64, tpu.core_type = #tpu.core_type<tc>, window_params = [{transform_indices = @transform_0, window_bounds = array<i64: 2, 128, 128>}, {transform_indices = @transform_1, window_bounds = array<i64: 1, 128>}, {pipeline_mode = #tpu.pipeline_mode<synchronous>, transform_indices = @transform_2, window_bounds = array<i64: 128, 128>}, {transform_indices = @transform_3, window_bounds = array<i64: 1, 128>}]} {
    %c0 = arith.constant 0 : index
    %c0_0 = arith.constant 0 : index
    %c0_1 = arith.constant 0 : index
    %0 = vector.load %arg1[%c0, %c0_0, %c0_1] : memref<2x128x128xbf16, #tpu.memory_space<vmem>>, vector<2x128x128xbf16>
    %1 = vector.shape_cast %0 : vector<2x128x128xbf16> to vector<256x128xbf16>
    %c0_2 = arith.constant 0 : index
    %c0_3 = arith.constant 0 : index
    %2 = vector.load %arg3[%c0_2, %c0_3] : memref<128x128xbf16, #tpu.memory_space<vmem>>, vector<128x128xbf16>
    %cst = arith.constant dense<0.000000e+00> : vector<256x128xf32>
    %3 = tpu.matmul %1, %2, %cst {dimension_numbers = #tpu.dot_dimension_numbers<[1], [0], [0], [1], [0, 0, 1, 1], [], []>} : vector<256x128xbf16>, vector<128x128xbf16>, vector<256x128xf32> -> vector<256x128xf32>
    %4 = vector.extract_strided_slice %3 {offsets = [0, 0], sizes = [128, 128], strides = [1, 1]} : vector<256x128xf32> to vector<128x128xf32>
    %5 = vector.extract_strided_slice %3 {offsets = [128, 0], sizes = [128, 128], strides = [1, 1]} : vector<256x128xf32> to vector<128x128xf32>
    %6 = arith.mulf %4, %5 : vector<128x128xf32>
    %cst_4 = arith.constant dense<0.000000e+00> : vector<128xf32>
    %7 = vector.multi_reduction <add>, %6, %cst_4 [1] : vector<128x128xf32> to vector<128xf32>
    %c0_5 = arith.constant 0 : index
    %c0_6 = arith.constant 0 : index
    %8 = vector.load %arg2[%c0_5, %c0_6] : memref<1x128xf32, #tpu.memory_space<vmem>>, vector<1x128xf32>
    %9 = tpu.reciprocal %8 {approx = true} : vector<1x128xf32> -> vector<1x128xf32>
    %10 = vector.shape_cast %7 : vector<128xf32> to vector<1x128xf32>
    %11 = arith.mulf %10, %9 : vector<1x128xf32>
    %c0_7 = arith.constant 0 : index
    %c0_8 = arith.constant 0 : index
    %12 = vector.load %arg4[%c0_7, %c0_8] : memref<1x128xf32, #tpu.memory_space<vmem>>, vector<1x128xf32>
    tpu.vector_store %arg4[%c0_7, %c0_8], %11 {strides = array<i32>} : memref<1x128xf32, #tpu.memory_space<vmem>>, vector<1x128xf32>,
    return
  }
  func.func @transform_0(%arg0: i32) -> (i32, i32, i32) {
    %c0_i32 = arith.constant 0 : i32
    %c0_i32_0 = arith.constant 0 : i32
    %c0_i32_1 = arith.constant 0 : i32
    return %c0_i32, %arg0, %c0_i32_0 : i32, i32, i32
  }
  func.func @transform_1(%arg0: i32) -> (i32, i32) {
    %c0_i32 = arith.constant 0 : i32
    %c0_i32_0 = arith.constant 0 : i32
    return %c0_i32, %arg0 : i32, i32
  }
  func.func @transform_2(%arg0: i32) -> (i32, i32) {
    %c0_i32 = arith.constant 0 : i32
    %c0_i32_0 = arith.constant 0 : i32
    %c0_i32_1 = arith.constant 0 : i32
    return %c0_i32, %c0_i32_0 : i32, i32
  }
  func.func @transform_3(%arg0: i32) -> (i32, i32) {
    %c0_i32 = arith.constant 0 : i32
    %c0_i32_0 = arith.constant 0 : i32
    return %c0_i32, %arg0 : i32, i32
  }
}

module attributes {stable_mosaic.version = 11 : i64} {
  func.func @rankgen_score_kernel(%arg0: i32, %arg1: memref<2x128x128xbf16, #tpu.memory_space<vmem>>, %arg2: memref<1x128xf32, #tpu.memory_space<vmem>>, %arg3: memref<128x128xbf16, #tpu.memory_space<vmem>>, %arg4: memref<1x128xf32, #tpu.memory_space<vmem>>) attributes {dimension_semantics = [#tpu.dimension_semantics<parallel>], iteration_bounds = array<i64: 2>, scalar_prefetch = 0 : i64, scratch_operands = 0 : i64, tpu.core_type = #tpu.core_type<tc>, window_params = [{transform_indices = @transform_0, window_bounds = array<i64: 2, 128, 128>}, {transform_indices = @transform_1, window_bounds = array<i64: 1, 128>}, {pipeline_mode = #tpu.pipeline_mode<synchronous>, transform_indices = @transform_2, window_bounds = array<i64: 128, 128>}, {transform_indices = @transform_3, window_bounds = array<i64: 1, 128>}]} {
    %c0 = arith.constant 0 : index
    %c0_0 = arith.constant 0 : index
    %c0_1 = arith.constant 0 : index
    %0 = vector.load %arg1[%c0, %c0_0, %c0_1] : memref<2x128x128xbf16, #tpu.memory_space<vmem>>, vector<2x128x128xbf16>
    %1 = vector.shape_cast %0 : vector<2x128x128xbf16> to vector<256x128xbf16>
    %c0_2 = arith.constant 0 : index
    %c0_3 = arith.constant 0 : index
    %2 = vector.load %arg3[%c0_2, %c0_3] : memref<128x128xbf16, #tpu.memory_space<vmem>>, vector<128x128xbf16>
    %cst = arith.constant dense<0.000000e+00> : vector<256x128xf32>
    %3 = tpu.matmul %1, %2, %cst {dimension_numbers = #tpu.dot_dimension_numbers<[1], [0], [0], [1], [0, 0, 1, 1], [], []>} : vector<256x128xbf16>, vector<128x128xbf16>, vector<256x128xf32> -> vector<256x128xf32>
    %4 = vector.extract_strided_slice %3 {offsets = [0, 0], sizes = [128, 128], strides = [1, 1]} : vector<256x128xf32> to vector<128x128xf32>
    %5 = vector.extract_strided_slice %3 {offsets = [128, 0], sizes = [128, 128], strides = [1, 1]} : vector<256x128xf32> to vector<128x128xf32>
    %6 = arith.mulf %4, %5 : vector<128x128xf32>
    %cst_4 = arith.constant dense<0.000000e+00> : vector<128xf32>
    %7 = vector.multi_reduction <add>, %6, %cst_4 [1] : vector<128x128xf32> to vector<128xf32>
    %c0_5 = arith.constant 0 : index
    %c0_6 = arith.constant 0 : index
    %8 = vector.load %arg2[%c0_5, %c0_6] : memref<1x128xf32, #tpu.memory_space<vmem>>, vector<1x128xf32>
    %9 = tpu.reciprocal %8 {approx = true} : vector<1x128xf32> -> vector<1x128xf32>
    %10 = vector.shape_cast %7 : vector<128xf32> to vector<1x128xf32>
    %11 = arith.mulf %10, %9 : vector<1x128xf32>
    %c0_7 = arith.constant 0 : index
    %c0_8 = arith.constant 0 : index
    %12 = vector.load %arg4[%c0_7, %c0_8] : memref<1x128xf32, #tpu.memory_space<vmem>>, vector<1x128xf32>
    tpu.vector_store %arg4[%c0_7, %c0_8], %11 {strides = array<i32>} : memref<1x128xf32, #tpu.memory_space<vmem>>, vector<1x128xf32>,
    return
  }
  func.func @transform_0(%arg0: i32) -> (i32, i32, i32) {
    %c0_i32 = arith.constant 0 : i32
    %c0_i32_0 = arith.constant 0 : i32
    %c0_i32_1 = arith.constant 0 : i32
    return %c0_i32, %arg0, %c0_i32_0 : i32, i32, i32
  }
  func.func @transform_1(%arg0: i32) -> (i32, i32) {
    %c0_i32 = arith.constant 0 : i32
    %c0_i32_0 = arith.constant 0 : i32
    return %c0_i32, %arg0 : i32, i32
  }
  func.func @transform_2(%arg0: i32) -> (i32, i32) {
    %c0_i32 = arith.constant 0 : i32
    %c0_i32_0 = arith.constant 0 : i32
    %c0_i32_1 = arith.constant 0 : i32
    return %c0_i32, %c0_i32_0 : i32, i32
  }
  func.func @transform_3(%arg0: i32) -> (i32, i32) {
    %c0_i32 = arith.constant 0 : i32
    %c0_i32_0 = arith.constant 0 : i32
    return %c0_i32, %arg0 : i32, i32
  }
}

</mosaic_0001>

<llo_original>
// kernel: tpu_custom_call.1
$region0: #{tpu_custom_call.1}
  #allocation0 [shape = 'u32[]', space=smem, size = 0x4, offset = 0x4, fixed_abs, tag = 'smem constant byte address 0x4 - core index']
  #allocation1 [shape = 'u32[72,128]{1,0:T(1,128)}', space=vmem, size = 0x9000, scoped, tag = 'internal scratch']
  #allocation9 [shape = 's32[]', space=sflag, size = 0x4, offset = 0, fixed_abs, tag = 'sflag constant byte address 0x0 - dummy sync flag']
  %s0 = inlined_call_operand.hbm [shape: bf16[2,200,128], index: 0, kind: input, shape index: {}]
  %s1 = inlined_call_operand.hbm [shape: f32[1,256], index: 1, kind: input, shape index: {}]
  %s2 = inlined_call_operand.hbm [shape: bf16[128,128], index: 2, kind: input, shape index: {}]
  %s3 = inlined_call_operand.hbm [shape: f32[1,256], index: 3, kind: output, shape index: {}]
  %s4 = sld [smem:[#allocation0]]
  $region57: #{tpu_custom_call.1} parent=0
    _
  %s6 = ssub.s32 1, %s4
  %s7 = scalar_select 0, %s6, %s4
  $region1: #{tpu_custom_call.1} parent=0
    #allocation2 [shape = 'u8[131072]{0}', space=vmem, size = 0x20000, scoped, tag = 'input window, operand 0']
    #allocation3 [shape = 's32[2]{0}', space=sflag, size = 0x8, scoped, tag = 'scoped memory for tpu_custom_call.1']
    #allocation4 [shape = 's32[2]{0}', space=sflag, size = 0x8, scoped, tag = 'scoped memory for tpu_custom_call.1']
    #allocation5 [shape = 'u8[1024]{0}', space=vmem, size = 0x400, scoped, tag = 'input window, operand 1']
    #allocation6 [shape = 's32[2]{0}', space=sflag, size = 0x8, scoped, tag = 'scoped memory for tpu_custom_call.1']
    #allocation7 [shape = 'u8[32768]{0}', space=vmem, size = 0x8000, scoped, tag = 'input window, operand 2, single buffered']
    #allocation8 [shape = 'u8[1024]{0}', space=vmem, size = 0x400, scoped, tag = 'output window, operand 0']
    %8 = vsyncpa [#allocation3], 0
    %s9 = scalar_lea.sflag [#allocation3], 1
    %10 = vsyncpa %s9, 0
    %11 = vsyncpa [#allocation6], 0
    %s12 = scalar_lea.sflag [#allocation6], 1
    %13 = vsyncpa %s12, 0
    %14 = vsyncpa [#allocation4], 0
    %s15 = scalar_lea.sflag [#allocation4], 1
    %16 = vsyncpa %s15, 0
    loop: start=0, step=1, limit=4
    $region2: #{tpu_custom_call.1} parent=1 // loop_pre_header
      _
    $region3: #{tpu_custom_call.1} parent=1 // loop_header
      %s18 = sphi 0, %s22
      %p19 = scmp.ge.s32.totalorder %s18, 4
      %s28 = sphi 0, %s30
      %s31 = sphi 0, %s28
      %s32 = sphi 0, %s31
      %s48 = sphi 0, %s32
      %s54 = sphi 0, %s56
      %s57 = sphi 0, %s54
      %s58 = sphi 0, %s57
      %s74 = sphi 0, %s58
      %s78 = sphi 0, %s78
      %s80 = sphi 0, %s78
      %s81 = sphi 0, %s80
      %s95 = sphi 0, %s81
      %s101 = sphi 0, %s103
      %s104 = sphi 0, %s101
      %s105 = sphi 0, %s104
      %s121 = sphi 0, %s105
    $region4: #{tpu_custom_call.1} parent=1 // loop_header_branch
      %21 = sbr.rel (%p19) target = $region8
    $region5: #{tpu_custom_call.1} parent=1 // loop_body
      %s23 = ssub.s32 %s18, 1
      %s24 = ssub.s32 %s18, 2
      %s25 = sadd.s32 %s18, 1
      %s26 = ssub.s32 %s18, %s25
      %p27 = scmp.eq.s32.totalorder %s26, 0
      %s29 = sadd.s32 %s28, 1
      %s30 = scalar_select %p27, %s28, %s29
      %p33 = pneg %p27
      %p34 = scmp.eq.s32.totalorder %s18, 1
      %p35 = por %p33, %p34
      %p36 = scmp.ne.s32.totalorder %s28, %s31
      %p37 = scmp.eq.s32.totalorder %s18, 0
      %p38 = por %p36, %p37
      %p39 = scmp.ne.s32.totalorder %s28, %s31
      %p40 = scmp.eq.s32.totalorder %s23, 1
      %p41 = por %p39, %p40
      %p42 = scmp.ne.s32.totalorder %s31, %s32
      %p43 = scmp.eq.s32.totalorder %s23, 0
      %p44 = por %p42, %p43
      %p45 = scmp.ne.s32.totalorder %s31, %s32
      %p46 = scmp.eq.s32.totalorder %s24, 1
      %p47 = por %p45, %p46
      %p49 = scmp.ne.s32.totalorder %s32, %s48
      %p50 = scmp.eq.s32.totalorder %s24, 0
      %p51 = por %p49, %p50
      %s52 = ssub.s32 %s18, %s25
      %p53 = scmp.eq.s32.totalorder %s52, 0
      %s55 = sadd.s32 %s54, 1
      %s56 = scalar_select %p53, %s54, %s55
      %p59 = pneg %p53
      %p60 = scmp.eq.s32.totalorder %s18, 1
      %p61 = por %p59, %p60
      %p62 = scmp.ne.s32.totalorder %s54, %s57
      %p63 = scmp.eq.s32.totalorder %s18, 0
      %p64 = por %p62, %p63
      %p65 = scmp.ne.s32.totalorder %s54, %s57
      %p66 = scmp.eq.s32.totalorder %s23, 1
      %p67 = por %p65, %p66
      %p68 = scmp.ne.s32.totalorder %s57, %s58
      %p69 = scmp.eq.s32.totalorder %s23, 0
      %p70 = por %p68, %p69
      %p71 = scmp.ne.s32.totalorder %s57, %s58
      %p72 = scmp.eq.s32.totalorder %s24, 1
      %p73 = por %p71, %p72
      %p75 = scmp.ne.s32.totalorder %s58, %s74
      %p76 = scmp.eq.s32.totalorder %s24, 0
      %p77 = por %p75, %p76
      %s79 = sadd.s32 %s78, 1
      %p82 = scmp.eq.s32.totalorder %s18, 1
      %p83 = scmp.ne.s32.totalorder %s78, %s80
      %p84 = scmp.eq.s32.totalorder %s18, 0
      %p85 = por %p83, %p84
      %p86 = scmp.ne.s32.totalorder %s78, %s80
      %p87 = scmp.eq.s32.totalorder %s23, 1
      %p88 = por %p86, %p87
      %p89 = scmp.ne.s32.totalorder %s80, %s81
      %p90 = scmp.eq.s32.totalorder %s23, 0
      %p91 = por %p89, %p90
      %p92 = scmp.ne.s32.totalorder %s80, %s81
      %p93 = scmp.eq.s32.totalorder %s24, 1
      %p94 = por %p92, %p93
      %p96 = scmp.ne.s32.totalorder %s81, %s95
      %p97 = scmp.eq.s32.totalorder %s24, 0
      %p98 = por %p96, %p97
      %s99 = ssub.s32 %s18, %s25
      %p100 = scmp.eq.s32.totalorder %s99, 0
      %s102 = sadd.s32 %s101, 1
      %s103 = scalar_select %p100, %s101, %s102
      %p106 = pneg %p100
      %p107 = scmp.eq.s32.totalorder %s18, 1
      %p108 = por %p106, %p107
      %p109 = scmp.ne.s32.totalorder %s101, %s104
      %p110 = scmp.eq.s32.totalorder %s18, 0
      %p111 = por %p109, %p110
      %p112 = scmp.ne.s32.totalorder %s101, %s104
      %p113 = scmp.eq.s32.totalorder %s23, 1
      %p114 = por %p112, %p113
      %p115 = scmp.ne.s32.totalorder %s104, %s105
      %p116 = scmp.eq.s32.totalorder %s23, 0
      %p117 = por %p115, %p116
      %p118 = scmp.ne.s32.totalorder %s104, %s105
      %p119 = scmp.eq.s32.totalorder %s24, 1
      %p120 = por %p118, %p119
      %p122 = scmp.ne.s32.totalorder %s105, %s121
      %p123 = scmp.eq.s32.totalorder %s24, 0
      %p124 = por %p122, %p123
      %p125 = scmp.le.s32.totalorder 1, %s18
      %p126 = scmp.lt.s32.totalorder %s18, 3
      %p127 = pnand %p125, %p126
      %p128 = pneg %p127
      // Predicated region
      $region9: #{tpu_custom_call.1} parent=5 // pred_check
        _
      $region10: #{tpu_custom_call.1} parent=5 // pred_check_branch
        %130 = sbr.rel (%p127) target = $region12
      $region11: #{tpu_custom_call.1} parent=5 // pred_region
        %s131 = ssub.s32 %s18, 1
        // Predicated region
        $region13: #{tpu_custom_call.1} parent=11 // pred_check
          %p132 = pneg %p91
        $region14: #{tpu_custom_call.1} parent=11 // pred_check_branch
          %134 = sbr.rel (%p132) target = $region16
        $region15: #{tpu_custom_call.1} parent=11 // pred_region
          %136 = vsyncadd [#allocation6], 0
          %s137 = sshll.u32 %s2, 4
          %s138 = int_to_ptr.hbm [resolvable:$true] %s137
          %s139 = sshll.u32 [#allocation7], 4
          %s140 = int_to_ptr.vmem [resolvable:$true] %s139
          %145 = dma.hbm_to_vmem [thread:$0]  %s138, 1024, %s140, [#allocation6], 64, 64, 4
        $region16: #{tpu_custom_call.1} parent=11 // pred_fallthru
          _
      $region12: #{tpu_custom_call.1} parent=5 // pred_fallthru
        _
      %p146 = scmp.lt.s32.totalorder %s18, 2
      // Predicated region
      $region17: #{tpu_custom_call.1} parent=5 // pred_check
        %p147 = pneg %p146
      $region18: #{tpu_custom_call.1} parent=5 // pred_check_branch
        %149 = sbr.rel (%p147) target = $region20
      $region19: #{tpu_custom_call.1} parent=5 // pred_region
        // Predicated region
        $region21: #{tpu_custom_call.1} parent=19 // pred_check
          %p150 = pneg %p38
        $region22: #{tpu_custom_call.1} parent=19 // pred_check_branch
          %152 = sbr.rel (%p150) target = $region24
        $region23: #{tpu_custom_call.1} parent=19 // pred_region
          #allocation10 [shape = 'u32[6]{0}', space=smem, size = 0x18, scoped, tag = 'DMA stride descriptor']
          %s153 = sand.u32 %s28, 1
          %s154 = scalar_lea.sflag [#allocation3], %s153
          %s155 = sand.u32 %s28, 1
          %s156 = smul.addr %s155, 128
          %s157 = scalar_lea.vmem [#allocation2], %s156
          %s158 = smul.u32 16, %s18
          %s159 = ssub.s32 25, %s158
          %p160 = scmp.lt.s32.totalorder %s159, 16
          %s161 = scalar_select %p160, %s159, 16
          %s162 = smul.u32 8, %s161
          %s163 = ssub.s32 128, %s162
          %s164 = sshll.u32 %s163, 4
          %165 = vsyncadd %s154, %s164
          %p166 = scmp.ne.s32.totalorder 0, %s162
          %s167 = smul.addr %s158, 4
          %s168 = scalar_lea.hbm %s0, %s167
          %s169 = smul.u32 4, %s161
          %s170 = smul.u32 %s169, 2
          %s172 = sshll.u32 1, 14
          %s173 = sxor.u32 4294967295, %s172
          %s175 = sld [smem:[#allocation0]]
          %s176 = sadd.s32 2, %s175
          %s178 = sshll.u32 7, 26
          %s179 = sxor.u32 4294967295, %s178
          %s180 = sand.u32 0, %s179
          %s181 = sshll.u32 %s176, 26
          %s182 = sor.u32 %s180, %s181
          %s183 = sshll.u32 %s168, 4
          %s184 = int_to_ptr.hbm [resolvable:$true] %s183
          %s185 = sshll.u32 %s157, 4
          %s186 = int_to_ptr.vmem [resolvable:$true] %s185
          %s187 = sshll.u32 %s170, 4
          %192 = sst [smem:[#allocation10]] 1600
          %s193 = scalar_lea.smem [#allocation10], 1
          %194 = sst [smem:[%s193]] 1024
          %s195 = scalar_lea.smem [#allocation10], 2
          %196 = sst [smem:[%s195]] %s161
          %s197 = scalar_lea.smem [#allocation10], 3
          %198 = sst [smem:[%s197]] 64
          %s199 = scalar_lea.smem [#allocation10], 4
          %200 = sst [smem:[%s199]] 64
          %s201 = scalar_lea.smem [#allocation10], 5
          %202 = sst [smem:[%s201]] 4
          %204 = dma.general (%p166), %s184, %s187, %s186, %s154, [#allocation9], [#allocation10], %s182, 0
        $region24: #{tpu_custom_call.1} parent=19 // pred_fallthru
          _
        // Predicated region
        $region25: #{tpu_custom_call.1} parent=19 // pred_check
          %p205 = pneg %p64
        $region26: #{tpu_custom_call.1} parent=19 // pred_check_branch
          %207 = sbr.rel (%p205) target = $region28
        $region27: #{tpu_custom_call.1} parent=19 // pred_region
          %s208 = sand.u32 %s18, 1
          %s209 = scalar_lea.sflag [#allocation6], %s208
          %s210 = sand.u32 %s54, 1
          %s211 = scalar_lea.vmem [#allocation5], %s210
          %213 = vsyncadd %s209, 0
          %s214 = scalar_lea.hbm %s1, %s18
          %s216 = sshll.u32 %s214, 4
          %s217 = int_to_ptr.hbm [resolvable:$true] %s216
          %s218 = sshll.u32 %s211, 4
          %s219 = int_to_ptr.vmem [resolvable:$true] %s218
          %221 = dma.hbm_to_vmem [thread:$0]  %s217, 16, %s219, %s209
        $region28: #{tpu_custom_call.1} parent=19 // pred_fallthru
          _
      $region20: #{tpu_custom_call.1} parent=5 // pred_fallthru
        _
      %p222 = scmp.le.s32.totalorder 1, %s18
      %p223 = scmp.lt.s32.totalorder %s18, 3
      %p224 = pnand %p222, %p223
      %p225 = pneg %p224
      // Predicated region
      $region29: #{tpu_custom_call.1} parent=5 // pred_check
        _
      $region30: #{tpu_custom_call.1} parent=5 // pred_check_branch
        %227 = sbr.rel (%p224) target = $region32
      $region31: #{tpu_custom_call.1} parent=5 // pred_region
        %s228 = ssub.s32 %s18, 1
        %s229 = sand.u32 %s31, 1
        %s230 = scalar_lea.sflag [#allocation3], %s229
        %s231 = sand.u32 %s31, 1
        %s232 = smul.addr %s231, 128
        %s233 = scalar_lea.vmem [#allocation2], %s232
        // Predicated region
        $region33: #{tpu_custom_call.1} parent=31 // pred_check
          %p234 = pneg %p44
        $region34: #{tpu_custom_call.1} parent=31 // pred_check_branch
          %236 = sbr.rel (%p234) target = $region36
        $region35: #{tpu_custom_call.1} parent=31 // pred_region
          %238 = dma.done %s230, 2048
        $region36: #{tpu_custom_call.1} parent=31 // pred_fallthru
          _
        %s239 = sand.u32 %s23, 1
        %s240 = scalar_lea.sflag [#allocation6], %s239
        %s241 = sand.u32 %s57, 1
        %s242 = scalar_lea.vmem [#allocation5], %s241
        // Predicated region
        $region37: #{tpu_custom_call.1} parent=31 // pred_check
          %p243 = pneg %p70
        $region38: #{tpu_custom_call.1} parent=31 // pred_check_branch
          %245 = sbr.rel (%p243) target = $region40
        $region39: #{tpu_custom_call.1} parent=31 // pred_region
          %247 = dma.done %s240, 16
        $region40: #{tpu_custom_call.1} parent=31 // pred_fallthru
          _
        // Predicated region
        $region41: #{tpu_custom_call.1} parent=31 // pred_check
          %p248 = pneg %p91
        $region42: #{tpu_custom_call.1} parent=31 // pred_check_branch
          %250 = sbr.rel (%p248) target = $region44
        $region43: #{tpu_custom_call.1} parent=31 // pred_region
          %252 = dma.done [#allocation6], 1024
        $region44: #{tpu_custom_call.1} parent=31 // pred_fallthru
          _
        %s253 = sand.u32 %s31, 1
        %s254 = scalar_lea.sflag [#allocation3], %s253
        %s255 = sand.u32 %s31, 1
        %s256 = smul.addr %s255, 128
        %s257 = scalar_lea.vmem [#allocation2], %s256
        %p258 = pneg %p44
        %p259 = pneg %p41
        %s260 = sand.u32 %s23, 1
        %s261 = scalar_lea.sflag [#allocation6], %s260
        %s262 = sand.u32 %s57, 1
        %s263 = scalar_lea.vmem [#allocation5], %s262
        %p264 = pneg %p70
        %p265 = pneg %p67
        %p266 = pneg %p91
        %p267 = pneg %p88
        %p268 = pneg %p117
        %p269 = pneg %p114
        %s270 = sand.u32 %s104, 1
        %s271 = scalar_lea.sflag [#allocation4], %s270
        %s272 = sand.u32 %s104, 1
        %s273 = scalar_lea.vmem [#allocation8], %s272
        %s274 = smul.u32 16, %s23
        %s275 = ssub.s32 25, %s274
        %p276 = scmp.lt.s32.totalorder %s275, 16
        %s277 = scalar_select %p276, %s275, 16
        %s278 = smul.u32 8, %s277
        %v279 = vld [vmem:[%s233] sm:$0xf]
        %v280 = vld [vmem:[%s233 + $0x4] sm:$0xf]
        %v281 = vld [vmem:[%s233 + $0x8] sm:$0xf]
        %v282 = vld [vmem:[%s233 + $0xc] sm:$0xf]
        %v283 = vld [vmem:[%s233 + $0x10] sm:$0xf]
        %v284 = vld [vmem:[%s233 + $0x14] sm:$0xf]
        %v285 = vld [vmem:[%s233 + $0x18] sm:$0xf]
        %v286 = vld [vmem:[%s233 + $0x1c] sm:$0xf]
        %v287 = vld [vmem:[%s233 + $0x20] sm:$0xf]
        %v288 = vld [vmem:[%s233 + $0x24] sm:$0xf]
        %v289 = vld [vmem:[%s233 + $0x28] sm:$0xf]
        %v290 = vld [vmem:[%s233 + $0x2c] sm:$0xf]
        %v291 = vld [vmem:[%s233 + $0x30] sm:$0xf]
        %v292 = vld [vmem:[%s233 + $0x34] sm:$0xf]
        %v293 = vld [vmem:[%s233 + $0x38] sm:$0xf]
        %v294 = vld [vmem:[%s233 + $0x3c] sm:$0xf]
        %v295 = vld [vmem:[%s233 + $0x40] sm:$0xf]
        %v296 = vld [vmem:[%s233 + $0x44] sm:$0xf]
        %v297 = vld [vmem:[%s233 + $0x48] sm:$0xf]
        %v298 = vld [vmem:[%s233 + $0x4c] sm:$0xf]
        %v299 = vld [vmem:[%s233 + $0x50] sm:$0xf]
        %v300 = vld [vmem:[%s233 + $0x54] sm:$0xf]
        %v301 = vld [vmem:[%s233 + $0x58] sm:$0xf]
        %v302 = vld [vmem:[%s233 + $0x5c] sm:$0xf]
        %v303 = vld [vmem:[%s233 + $0x60] sm:$0xf]
        %v304 = vld [vmem:[%s233 + $0x64] sm:$0xf]
        %v305 = vld [vmem:[%s233 + $0x68] sm:$0xf]
        %v306 = vld [vmem:[%s233 + $0x6c] sm:$0xf]
        %v307 = vld [vmem:[%s233 + $0x70] sm:$0xf]
        %v308 = vld [vmem:[%s233 + $0x74] sm:$0xf]
        %v309 = vld [vmem:[%s233 + $0x78] sm:$0xf]
        %v310 = vld [vmem:[%s233 + $0x7c] sm:$0xf]
        %v311 = vld [vmem:[#allocation7] sm:$0xf]
        %v312 = vld [vmem:[#allocation7 + $0x4] sm:$0xf]
        %v313 = vld [vmem:[#allocation7 + $0x8] sm:$0xf]
        %v314 = vld [vmem:[#allocation7 + $0xc] sm:$0xf]
        %v315 = vld [vmem:[#allocation7 + $0x10] sm:$0xf]
        %v316 = vld [vmem:[#allocation7 + $0x14] sm:$0xf]
        %v317 = vld [vmem:[#allocation7 + $0x18] sm:$0xf]
        %v318 = vld [vmem:[#allocation7 + $0x1c] sm:$0xf]
        %v319 = vld [vmem:[#allocation7 + $0x20] sm:$0xf]
        %v320 = vld [vmem:[#allocation7 + $0x24] sm:$0xf]
        %v321 = vld [vmem:[#allocation7 + $0x28] sm:$0xf]
        %v322 = vld [vmem:[#allocation7 + $0x2c] sm:$0xf]
        %v323 = vld [vmem:[#allocation7 + $0x30] sm:$0xf]
        %v324 = vld [vmem:[#allocation7 + $0x34] sm:$0xf]
        %v325 = vld [vmem:[#allocation7 + $0x38] sm:$0xf]
        %v326 = vld [vmem:[#allocation7 + $0x3c] sm:$0xf]
        %v359 = vunpack.c.l.b16 %v279
        %v360 = vunpack.c.l.b16 %v280
        %v361 = vunpack.c.l.b16 %v281
        %v362 = vunpack.c.l.b16 %v282
        %v363 = vunpack.c.l.b16 %v283
        %v364 = vunpack.c.l.b16 %v284
        %v365 = vunpack.c.l.b16 %v285
        %v366 = vunpack.c.l.b16 %v286
        %v367 = vunpack.c.l.b16 %v287
        %v368 = vunpack.c.l.b16 %v288
        %v369 = vunpack.c.l.b16 %v289
        %v370 = vunpack.c.l.b16 %v290
        %v371 = vunpack.c.l.b16 %v291
        %v372 = vunpack.c.l.b16 %v292
        %v373 = vunpack.c.l.b16 %v293
        %v374 = vunpack.c.l.b16 %v294
        %v375 = vunpack.c.l.b16 %v295
        %v376 = vunpack.c.l.b16 %v296
        %v377 = vunpack.c.l.b16 %v297
        %v378 = vunpack.c.l.b16 %v298
        %v379 = vunpack.c.l.b16 %v299
        %v380 = vunpack.c.l.b16 %v300
        %v381 = vunpack.c.l.b16 %v301
        %v382 = vunpack.c.l.b16 %v302
        %v383 = vunpack.c.l.b16 %v303
        %v384 = vunpack.c.l.b16 %v304
        %v385 = vunpack.c.l.b16 %v305
        %v386 = vunpack.c.l.b16 %v306
        %v387 = vunpack.c.l.b16 %v307
        %v388 = vunpack.c.l.b16 %v308
        %v389 = vunpack.c.l.b16 %v309
        %v390 = vunpack.c.l.b16 %v310
        %v391 = vpack.c.b16 %v360, %v359
        %v392 = vpack.c.b16 %v362, %v361
        %v393 = vpack.c.b16 %v364, %v363
        %v394 = vpack.c.b16 %v366, %v365
        %v395 = vpack.c.b16 %v368, %v367
        %v396 = vpack.c.b16 %v370, %v369
        %v397 = vpack.c.b16 %v372, %v371
        %v398 = vpack.c.b16 %v374, %v373
        %v399 = vpack.c.b16 %v376, %v375
        %v400 = vpack.c.b16 %v378, %v377
        %v401 = vpack.c.b16 %v380, %v379
        %v402 = vpack.c.b16 %v382, %v381
        %v403 = vpack.c.b16 %v384, %v383
        %v404 = vpack.c.b16 %v386, %v385
        %v405 = vpack.c.b16 %v388, %v387
        %v406 = vpack.c.b16 %v390, %v389
        %v439 = vunpack.c.l.b16 %v311
        %v440 = vunpack.c.l.b16 %v312
        %v441 = vunpack.c.l.b16 %v313
        %v442 = vunpack.c.l.b16 %v314
        %v443 = vunpack.c.l.b16 %v315
        %v444 = vunpack.c.l.b16 %v316
        %v445 = vunpack.c.l.b16 %v317
        %v446 = vunpack.c.l.b16 %v318
        %v447 = vunpack.c.l.b16 %v319
        %v448 = vunpack.c.l.b16 %v320
        %v449 = vunpack.c.l.b16 %v321
        %v450 = vunpack.c.l.b16 %v322
        %v451 = vunpack.c.l.b16 %v323
        %v452 = vunpack.c.l.b16 %v324
        %v453 = vunpack.c.l.b16 %v325
        %v454 = vunpack.c.l.b16 %v326
        %v455 = vpack.c.b16 %v440, %v439
        %v456 = vpack.c.b16 %v442, %v441
        %v457 = vpack.c.b16 %v444, %v443
        %v458 = vpack.c.b16 %v446, %v445
        %v459 = vpack.c.b16 %v448, %v447
        %v460 = vpack.c.b16 %v450, %v449
        %v461 = vpack.c.b16 %v452, %v451
        %v462 = vpack.c.b16 %v454, %v453
        %471 = vmatpush.bf16.msra.mxu0 %v462
        %472 = vmatpush.bf16.msra.mxu0 %v461
        %473 = vmatpush.bf16.msra.mxu0 %v460
        %474 = vmatpush.bf16.msra.mxu0 %v459
        %475 = vmatpush.bf16.msra.mxu0 %v458
        %476 = vmatpush.bf16.msra.mxu0 %v457
        %477 = vmatpush.bf16.msra.mxu0 %v456
        %478 = vmatpush.bf16.msra.mxu0 %v455
        %479 = vmatmul.bf16.gmra.mxu0 %v391
        %v480 = vpop.f32.mrf.mxu0
        %v481 = vadd.f32 0.0, %v480
        %v482 = vpop.f32.mrf.mxu0
        %v483 = vadd.f32 0.0, %v482
        %484 = vmatmul.bf16.gmra.mxu0 %v392
        %v485 = vpop.f32.mrf.mxu0
        %v486 = vadd.f32 0.0, %v485
        %v487 = vpop.f32.mrf.mxu0
        %v488 = vadd.f32 0.0, %v487
        %489 = vmatmul.bf16.gmra.mxu0 %v393
        %v490 = vpop.f32.mrf.mxu0
        %v491 = vadd.f32 0.0, %v490
        %v492 = vpop.f32.mrf.mxu0
        %v493 = vadd.f32 0.0, %v492
        %494 = vmatmul.bf16.gmra.mxu0 %v394
        %v495 = vpop.f32.mrf.mxu0
        %v496 = vadd.f32 0.0, %v495
        %v497 = vpop.f32.mrf.mxu0
        %v498 = vadd.f32 0.0, %v497
        %499 = vmatmul.bf16.gmra.mxu0 %v395
        %v500 = vpop.f32.mrf.mxu0
        %v501 = vadd.f32 0.0, %v500
        %v502 = vpop.f32.mrf.mxu0
        %v503 = vadd.f32 0.0, %v502
        %504 = vmatmul.bf16.gmra.mxu0 %v396
        %v505 = vpop.f32.mrf.mxu0
        %v506 = vadd.f32 0.0, %v505
        %v507 = vpop.f32.mrf.mxu0
        %v508 = vadd.f32 0.0, %v507
        %509 = vmatmul.bf16.gmra.mxu0 %v397
        %v510 = vpop.f32.mrf.mxu0
        %v511 = vadd.f32 0.0, %v510
        %v512 = vpop.f32.mrf.mxu0
        %v513 = vadd.f32 0.0, %v512
        %514 = vmatmul.bf16.gmra.mxu0 %v398
        %v515 = vpop.f32.mrf.mxu0
        %v516 = vadd.f32 0.0, %v515
        %v517 = vpop.f32.mrf.mxu0
        %v518 = vadd.f32 0.0, %v517
        %519 = vmatmul.bf16.gmra.mxu0 %v399
        %v520 = vpop.f32.mrf.mxu0
        %v521 = vadd.f32 0.0, %v520
        %v522 = vpop.f32.mrf.mxu0
        %v523 = vadd.f32 0.0, %v522
        %524 = vmatmul.bf16.gmra.mxu0 %v400
        %v525 = vpop.f32.mrf.mxu0
        %v526 = vadd.f32 0.0, %v525
        %v527 = vpop.f32.mrf.mxu0
        %v528 = vadd.f32 0.0, %v527
        %529 = vmatmul.bf16.gmra.mxu0 %v401
        %v530 = vpop.f32.mrf.mxu0
        %v531 = vadd.f32 0.0, %v530
        %v532 = vpop.f32.mrf.mxu0
        %v533 = vadd.f32 0.0, %v532
        %534 = vmatmul.bf16.gmra.mxu0 %v402
        %v535 = vpop.f32.mrf.mxu0
        %v536 = vadd.f32 0.0, %v535
        %v537 = vpop.f32.mrf.mxu0
        %v538 = vadd.f32 0.0, %v537
        %539 = vmatmul.bf16.gmra.mxu0 %v403
        %v540 = vpop.f32.mrf.mxu0
        %v541 = vadd.f32 0.0, %v540
        %v542 = vpop.f32.mrf.mxu0
        %v543 = vadd.f32 0.0, %v542
        %544 = vmatmul.bf16.gmra.mxu0 %v404
        %v545 = vpop.f32.mrf.mxu0
        %v546 = vadd.f32 0.0, %v545
        %v547 = vpop.f32.mrf.mxu0
        %v548 = vadd.f32 0.0, %v547
        %549 = vmatmul.bf16.gmra.mxu0 %v405
        %v550 = vpop.f32.mrf.mxu0
        %v551 = vadd.f32 0.0, %v550
        %v552 = vpop.f32.mrf.mxu0
        %v553 = vadd.f32 0.0, %v552
        %554 = vmatmul.bf16.gmra.mxu0 %v406
        %v555 = vpop.f32.mrf.mxu0
        %v556 = vadd.f32 0.0, %v555
        %v557 = vpop.f32.mrf.mxu0
        %v558 = vadd.f32 0.0, %v557
        %559 = vdwg.mxu0
        %v560 = vmul.f32 %v481, %v521
        %v561 = vmul.f32 %v483, %v523
        %v562 = vmul.f32 %v486, %v526
        %v563 = vmul.f32 %v488, %v528
        %v564 = vmul.f32 %v491, %v531
        %v565 = vmul.f32 %v493, %v533
        %v566 = vmul.f32 %v496, %v536
        %v567 = vmul.f32 %v498, %v538
        %v568 = vmul.f32 %v501, %v541
        %v569 = vmul.f32 %v503, %v543
        %v570 = vmul.f32 %v506, %v546
        %v571 = vmul.f32 %v508, %v548
        %v572 = vmul.f32 %v511, %v551
        %v573 = vmul.f32 %v513, %v553
        %v574 = vmul.f32 %v516, %v556
        %v575 = vmul.f32 %v518, %v558
        %576 = vadd.xlane.f32.xlu0 %v560
        %v577 = vpop.xlane.xlu0 %576
        %578 = vadd.xlane.f32.xlu0 %v561
        %v579 = vpop.xlane.xlu0 %578
        %580 = vadd.xlane.f32.xlu0 %v562
        %v581 = vpop.xlane.xlu0 %580
        %582 = vadd.xlane.f32.xlu0 %v563
        %v583 = vpop.xlane.xlu0 %582
        %584 = vadd.xlane.f32.xlu0 %v564
        %v585 = vpop.xlane.xlu0 %584
        %586 = vadd.xlane.f32.xlu0 %v565
        %v587 = vpop.xlane.xlu0 %586
        %588 = vadd.xlane.f32.xlu0 %v566
        %v589 = vpop.xlane.xlu0 %588
        %590 = vadd.xlane.f32.xlu0 %v567
        %v591 = vpop.xlane.xlu0 %590
        %592 = vadd.xlane.f32.xlu0 %v568
        %v593 = vpop.xlane.xlu0 %592
        %594 = vadd.xlane.f32.xlu0 %v569
        %v595 = vpop.xlane.xlu0 %594
        %596 = vadd.xlane.f32.xlu0 %v570
        %v597 = vpop.xlane.xlu0 %596
        %598 = vadd.xlane.f32.xlu0 %v571
        %v599 = vpop.xlane.xlu0 %598
        %600 = vadd.xlane.f32.xlu0 %v572
        %v601 = vpop.xlane.xlu0 %600
        %602 = vadd.xlane.f32.xlu0 %v573
        %v603 = vpop.xlane.xlu0 %602
        %604 = vadd.xlane.f32.xlu0 %v574
        %v605 = vpop.xlane.xlu0 %604
        %606 = vadd.xlane.f32.xlu0 %v575
        %v607 = vpop.xlane.xlu0 %606
        %v608 = vld [vmem:[%s242] sm:$0x1]
        %v609 = vrcp.pop %v608
        %v611 = vperm.slane %v609, 0
        %v612 = vlaneseq
        %v613 = vshrl.u32 %v612, 7
        %615 = vset.pattern.permute.xlu0 %v613
        %616 = vperm.xlu0 %615, %v611
        %v617 = vpop.permute.xlu0 %616
        %v618 = vlaneseq
        %v619 = vshrl.u32 %v618, 7
        %v620 = vadd.s32 %v619, 8
        %621 = vset.pattern.permute.xlu0 %v620
        %622 = vperm.xlu0 %621, %v611
        %v623 = vpop.permute.xlu0 %622
        %v624 = vlaneseq
        %v625 = vshrl.u32 %v624, 7
        %v626 = vadd.s32 %v625, 16
        %627 = vset.pattern.permute.xlu0 %v626
        %628 = vperm.xlu0 %627, %v611
        %v629 = vpop.permute.xlu0 %628
        %v630 = vlaneseq
        %v631 = vshrl.u32 %v630, 7
        %v632 = vadd.s32 %v631, 24
        %633 = vset.pattern.permute.xlu0 %v632
        %634 = vperm.xlu0 %633, %v611
        %v635 = vpop.permute.xlu0 %634
        %v636 = vlaneseq
        %v637 = vshrl.u32 %v636, 7
        %v638 = vadd.s32 %v637, 32
        %639 = vset.pattern.permute.xlu0 %v638
        %640 = vperm.xlu0 %639, %v611
        %v641 = vpop.permute.xlu0 %640
        %v642 = vlaneseq
        %v643 = vshrl.u32 %v642, 7
        %v644 = vadd.s32 %v643, 40
        %645 = vset.pattern.permute.xlu0 %v644
        %646 = vperm.xlu0 %645, %v611
        %v647 = vpop.permute.xlu0 %646
        %v648 = vlaneseq
        %v649 = vshrl.u32 %v648, 7
        %v650 = vadd.s32 %v649, 48
        %651 = vset.pattern.permute.xlu0 %v650
        %652 = vperm.xlu0 %651, %v611
        %v653 = vpop.permute.xlu0 %652
        %v654 = vlaneseq
        %v655 = vshrl.u32 %v654, 7
        %v656 = vadd.s32 %v655, 56
        %657 = vset.pattern.permute.xlu0 %v656
        %658 = vperm.xlu0 %657, %v611
        %v659 = vpop.permute.xlu0 %658
        %v660 = vlaneseq
        %v661 = vshrl.u32 %v660, 7
        %v662 = vadd.s32 %v661, 64
        %663 = vset.pattern.permute.xlu0 %v662
        %664 = vperm.xlu0 %663, %v611
        %v665 = vpop.permute.xlu0 %664
        %v666 = vlaneseq
        %v667 = vshrl.u32 %v666, 7
        %v668 = vadd.s32 %v667, 72
        %669 = vset.pattern.permute.xlu0 %v668
        %670 = vperm.xlu0 %669, %v611
        %v671 = vpop.permute.xlu0 %670
        %v672 = vlaneseq
        %v673 = vshrl.u32 %v672, 7
        %v674 = vadd.s32 %v673, 80
        %675 = vset.pattern.permute.xlu0 %v674
        %676 = vperm.xlu0 %675, %v611
        %v677 = vpop.permute.xlu0 %676
        %v678 = vlaneseq
        %v679 = vshrl.u32 %v678, 7
        %v680 = vadd.s32 %v679, 88
        %681 = vset.pattern.permute.xlu0 %v680
        %682 = vperm.xlu0 %681, %v611
        %v683 = vpop.permute.xlu0 %682
        %v684 = vlaneseq
        %v685 = vshrl.u32 %v684, 7
        %v686 = vadd.s32 %v685, 96
        %687 = vset.pattern.permute.xlu0 %v686
        %688 = vperm.xlu0 %687, %v611
        %v689 = vpop.permute.xlu0 %688
        %v690 = vlaneseq
        %v691 = vshrl.u32 %v690, 7
        %v692 = vadd.s32 %v691, 104
        %693 = vset.pattern.permute.xlu0 %v692
        %694 = vperm.xlu0 %693, %v611
        %v695 = vpop.permute.xlu0 %694
        %v696 = vlaneseq
        %v697 = vshrl.u32 %v696, 7
        %v698 = vadd.s32 %v697, 112
        %699 = vset.pattern.permute.xlu0 %v698
        %700 = vperm.xlu0 %699, %v611
        %v701 = vpop.permute.xlu0 %700
        %v702 = vlaneseq
        %v703 = vshrl.u32 %v702, 7
        %v704 = vadd.s32 %v703, 120
        %705 = vset.pattern.permute.xlu0 %v704
        %706 = vperm.xlu0 %705, %v611
        %v707 = vpop.permute.xlu0 %706
        %v724 = vmul.f32 %v577, %v617
        %v725 = vmul.f32 %v579, %v623
        %v726 = vmul.f32 %v581, %v629
        %v727 = vmul.f32 %v583, %v635
        %v728 = vmul.f32 %v585, %v641
        %v729 = vmul.f32 %v587, %v647
        %v730 = vmul.f32 %v589, %v653
        %v731 = vmul.f32 %v591, %v659
        %v732 = vmul.f32 %v593, %v665
        %v733 = vmul.f32 %v595, %v671
        %v734 = vmul.f32 %v597, %v677
        %v735 = vmul.f32 %v599, %v683
        %v736 = vmul.f32 %v601, %v689
        %v737 = vmul.f32 %v603, %v695
        %v738 = vmul.f32 %v605, %v701
        %v739 = vmul.f32 %v607, %v707
        %756 = vset.pattern.permute.xlu0 0
        %757 = vperm.xlu0 %756, %v724
        %v758 = vpop.permute.xlu0 %757
        %759 = vset.pattern.permute.xlu0 0
        %760 = vperm.xlu0 %759, %v725
        %v761 = vpop.permute.xlu0 %760
        %762 = vset.pattern.permute.xlu0 0
        %763 = vperm.xlu0 %762, %v726
        %v764 = vpop.permute.xlu0 %763
        %765 = vset.pattern.permute.xlu0 0
        %766 = vperm.xlu0 %765, %v727
        %v767 = vpop.permute.xlu0 %766
        %768 = vset.pattern.permute.xlu0 0
        %769 = vperm.xlu0 %768, %v728
        %v770 = vpop.permute.xlu0 %769
        %771 = vset.pattern.permute.xlu0 0
        %772 = vperm.xlu0 %771, %v729
        %v773 = vpop.permute.xlu0 %772
        %774 = vset.pattern.permute.xlu0 0
        %775 = vperm.xlu0 %774, %v730
        %v776 = vpop.permute.xlu0 %775
        %777 = vset.pattern.permute.xlu0 0
        %778 = vperm.xlu0 %777, %v731
        %v779 = vpop.permute.xlu0 %778
        %780 = vset.pattern.permute.xlu0 0
        %781 = vperm.xlu0 %780, %v732
        %v782 = vpop.permute.xlu0 %781
        %783 = vset.pattern.permute.xlu0 0
        %784 = vperm.xlu0 %783, %v733
        %v785 = vpop.permute.xlu0 %784
        %786 = vset.pattern.permute.xlu0 0
        %787 = vperm.xlu0 %786, %v734
        %v788 = vpop.permute.xlu0 %787
        %789 = vset.pattern.permute.xlu0 0
        %790 = vperm.xlu0 %789, %v735
        %v791 = vpop.permute.xlu0 %790
        %792 = vset.pattern.permute.xlu0 0
        %793 = vperm.xlu0 %792, %v736
        %v794 = vpop.permute.xlu0 %793
        %795 = vset.pattern.permute.xlu0 0
        %796 = vperm.xlu0 %795, %v737
        %v797 = vpop.permute.xlu0 %796
        %798 = vset.pattern.permute.xlu0 0
        %799 = vperm.xlu0 %798, %v738
        %v800 = vpop.permute.xlu0 %799
        %801 = vset.pattern.permute.xlu0 0
        %802 = vperm.xlu0 %801, %v739
        %v803 = vpop.permute.xlu0 %802
        %v804 = vlaneseq
        %v805 = vand.u32 %v804, 127
        %v806 = vperm.slane %v758, %v805
        %v807 = vadd.s32 %v805, 4294967288
        %v808 = vperm.slane %v761, %v807
        %vm809 = vcmask 130112
        %v810 = vsel %vm809, %v808, %v806
        %v811 = vadd.s32 %v805, 4294967280
        %v812 = vperm.slane %v764, %v811
        %vm813 = vcmask 195712
        %v814 = vsel %vm813, %v812, %v810
        %v815 = vadd.s32 %v805, 4294967272
        %v816 = vperm.slane %v767, %v815
        %vm817 = vcmask 261312
        %v818 = vsel %vm817, %v816, %v814
        %v819 = vadd.s32 %v805, 4294967264
        %v820 = vperm.slane %v770, %v819
        %vm821 = vcmask 326912
        %v822 = vsel %vm821, %v820, %v818
        %v823 = vadd.s32 %v805, 4294967256
        %v824 = vperm.slane %v773, %v823
        %vm825 = vcmask 392512
        %v826 = vsel %vm825, %v824, %v822
        %v827 = vadd.s32 %v805, 4294967248
        %v828 = vperm.slane %v776, %v827
        %vm829 = vcmask 458112
        %v830 = vsel %vm829, %v828, %v826
        %v831 = vadd.s32 %v805, 4294967240
        %v832 = vperm.slane %v779, %v831
        %vm833 = vcmask 523712
        %v834 = vsel %vm833, %v832, %v830
        %v835 = vadd.s32 %v805, 4294967232
        %v836 = vperm.slane %v782, %v835
        %vm837 = vcmask 589312
        %v838 = vsel %vm837, %v836, %v834
        %v839 = vadd.s32 %v805, 4294967224
        %v840 = vperm.slane %v785, %v839
        %vm841 = vcmask 654912
        %v842 = vsel %vm841, %v840, %v838
        %v843 = vadd.s32 %v805, 4294967216
        %v844 = vperm.slane %v788, %v843
        %vm845 = vcmask 720512
        %v846 = vsel %vm845, %v844, %v842
        %v847 = vadd.s32 %v805, 4294967208
        %v848 = vperm.slane %v791, %v847
        %vm849 = vcmask 786112
        %v850 = vsel %vm849, %v848, %v846
        %v851 = vadd.s32 %v805, 4294967200
        %v852 = vperm.slane %v794, %v851
        %vm853 = vcmask 851712
        %v854 = vsel %vm853, %v852, %v850
        %v855 = vadd.s32 %v805, 4294967192
        %v856 = vperm.slane %v797, %v855
        %vm857 = vcmask 917312
        %v858 = vsel %vm857, %v856, %v854
        %v859 = vadd.s32 %v805, 4294967184
        %v860 = vperm.slane %v800, %v859
        %vm861 = vcmask 982912
        %v862 = vsel %vm861, %v860, %v858
        %v863 = vadd.s32 %v805, 4294967176
        %v864 = vperm.slane %v803, %v863
        %vm865 = vcmask 1048512
        %v866 = vsel %vm865, %v864, %v862
        %868 = vst [vmem:[%s273] sm:$0x1] %v866
        %s869 = sand.u32 %s104, 1
        %s870 = scalar_lea.sflag [#allocation4], %s869
        %s871 = sand.u32 %s104, 1
        %s872 = scalar_lea.vmem [#allocation8], %s871
        // Predicated region
        $region45: #{tpu_custom_call.1} parent=31 // pred_check
          %p873 = pneg %p114
        $region46: #{tpu_custom_call.1} parent=31 // pred_check_branch
          %875 = sbr.rel (%p873) target = $region48
        $region47: #{tpu_custom_call.1} parent=31 // pred_region
          %877 = vsyncadd %s870, 0
          %s878 = scalar_lea.hbm %s3, %s23
          %s880 = sshll.u32 %s872, 4
          %s881 = int_to_ptr.vmem [resolvable:$true] %s880
          %s882 = sshll.u32 %s878, 4
          %s883 = int_to_ptr.hbm [resolvable:$true] %s882
          %885 = dma.vmem_to_hbm [thread:$0]  %s881, 16, %s883, %s870
        $region48: #{tpu_custom_call.1} parent=31 // pred_fallthru
          _
      $region32: #{tpu_custom_call.1} parent=5 // pred_fallthru
        _
      %p886 = scmp.le.s32.totalorder 2, %s18
      // Predicated region
      $region49: #{tpu_custom_call.1} parent=5 // pred_check
        %p887 = pneg %p886
      $region50: #{tpu_custom_call.1} parent=5 // pred_check_branch
        %889 = sbr.rel (%p887) target = $region52
      $region51: #{tpu_custom_call.1} parent=5 // pred_region
        %s890 = ssub.s32 %s18, 2
        // Predicated region
        $region53: #{tpu_custom_call.1} parent=51 // pred_check
          %p891 = pneg %p120
        $region54: #{tpu_custom_call.1} parent=51 // pred_check_branch
          %893 = sbr.rel (%p891) target = $region56
        $region55: #{tpu_custom_call.1} parent=51 // pred_region
          %s894 = sand.u32 %s105, 1
          %s895 = scalar_lea.sflag [#allocation4], %s894
          %s896 = sand.u32 %s105, 1
          %s897 = scalar_lea.vmem [#allocation8], %s896
          %899 = dma.done %s895, 16
        $region56: #{tpu_custom_call.1} parent=51 // pred_fallthru
          _
      $region52: #{tpu_custom_call.1} parent=5 // pred_fallthru
        _
    $region6: #{tpu_custom_call.1} parent=1 // loop_footer
      %s22 = sadd.s32 1, %s18
    $region7: #{tpu_custom_call.1} parent=1 // loop_footer_branch
      %17 = sbr.rel target = $region3
    $region8: #{tpu_custom_call.1} parent=1 // loop_exit
      _
    %900 = vsyncpa [#allocation3], 1
    %s901 = scalar_lea.sflag [#allocation3], 1
    %902 = vsyncpa %s901, 1
    %903 = vsyncpa [#allocation6], 1
    %s904 = scalar_lea.sflag [#allocation6], 1
    %905 = vsyncpa %s904, 1
    %906 = vsyncpa [#allocation4], 1
    %s907 = scalar_lea.sflag [#allocation4], 1
    %908 = vsyncpa %s907, 1

// kernel: tpu_custom_call.1
$region0: #{tpu_custom_call.1}
  #allocation0 [shape = 'u32[]', space=smem, size = 0x4, offset = 0x4, fixed_abs, tag = 'smem constant byte address 0x4 - core index']
  #allocation1 [shape = 'u32[72,128]{1,0:T(1,128)}', space=vmem, size = 0x9000, scoped, tag = 'internal scratch']
  #allocation9 [shape = 's32[]', space=sflag, size = 0x4, offset = 0, fixed_abs, tag = 'sflag constant byte address 0x0 - dummy sync flag']
  %s0 = inlined_call_operand.hbm [shape: bf16[2,200,128], index: 0, kind: input, shape index: {}]
  %s1 = inlined_call_operand.hbm [shape: f32[1,256], index: 1, kind: input, shape index: {}]
  %s2 = inlined_call_operand.hbm [shape: bf16[128,128], index: 2, kind: input, shape index: {}]
  %s3 = inlined_call_operand.hbm [shape: f32[1,256], index: 3, kind: output, shape index: {}]
  %s4 = sld [smem:[#allocation0]]
  $region57: #{tpu_custom_call.1} parent=0
    _
  %s6 = ssub.s32 1, %s4
  %s7 = scalar_select 0, %s6, %s4
  $region1: #{tpu_custom_call.1} parent=0
    #allocation2 [shape = 'u8[131072]{0}', space=vmem, size = 0x20000, scoped, tag = 'input window, operand 0']
    #allocation3 [shape = 's32[2]{0}', space=sflag, size = 0x8, scoped, tag = 'scoped memory for tpu_custom_call.1']
    #allocation4 [shape = 's32[2]{0}', space=sflag, size = 0x8, scoped, tag = 'scoped memory for tpu_custom_call.1']
    #allocation5 [shape = 'u8[1024]{0}', space=vmem, size = 0x400, scoped, tag = 'input window, operand 1']
    #allocation6 [shape = 's32[2]{0}', space=sflag, size = 0x8, scoped, tag = 'scoped memory for tpu_custom_call.1']
    #allocation7 [shape = 'u8[32768]{0}', space=vmem, size = 0x8000, scoped, tag = 'input window, operand 2, single buffered']
    #allocation8 [shape = 'u8[1024]{0}', space=vmem, size = 0x400, scoped, tag = 'output window, operand 0']
    %8 = vsyncpa [#allocation3], 0
    %s9 = scalar_lea.sflag [#allocation3], 1
    %10 = vsyncpa %s9, 0
    %11 = vsyncpa [#allocation6], 0
    %s12 = scalar_lea.sflag [#allocation6], 1
    %13 = vsyncpa %s12, 0
    %14 = vsyncpa [#allocation4], 0
    %s15 = scalar_lea.sflag [#allocation4], 1
    %16 = vsyncpa %s15, 0
    loop: start=0, step=1, limit=4
    $region2: #{tpu_custom_call.1} parent=1 // loop_pre_header
      _
    $region3: #{tpu_custom_call.1} parent=1 // loop_header
      %s18 = sphi 0, %s22
      %p19 = scmp.ge.s32.totalorder %s18, 4
      %s28 = sphi 0, %s30
      %s31 = sphi 0, %s28
      %s32 = sphi 0, %s31
      %s48 = sphi 0, %s32
      %s54 = sphi 0, %s56
      %s57 = sphi 0, %s54
      %s58 = sphi 0, %s57
      %s74 = sphi 0, %s58
      %s78 = sphi 0, %s78
      %s80 = sphi 0, %s78
      %s81 = sphi 0, %s80
      %s95 = sphi 0, %s81
      %s101 = sphi 0, %s103
      %s104 = sphi 0, %s101
      %s105 = sphi 0, %s104
      %s121 = sphi 0, %s105
    $region4: #{tpu_custom_call.1} parent=1 // loop_header_branch
      %21 = sbr.rel (%p19) target = $region8
    $region5: #{tpu_custom_call.1} parent=1 // loop_body
      %s23 = ssub.s32 %s18, 1
      %s24 = ssub.s32 %s18, 2
      %s25 = sadd.s32 %s18, 1
      %s26 = ssub.s32 %s18, %s25
      %p27 = scmp.eq.s32.totalorder %s26, 0
      %s29 = sadd.s32 %s28, 1
      %s30 = scalar_select %p27, %s28, %s29
      %p33 = pneg %p27
      %p34 = scmp.eq.s32.totalorder %s18, 1
      %p35 = por %p33, %p34
      %p36 = scmp.ne.s32.totalorder %s28, %s31
      %p37 = scmp.eq.s32.totalorder %s18, 0
      %p38 = por %p36, %p37
      %p39 = scmp.ne.s32.totalorder %s28, %s31
      %p40 = scmp.eq.s32.totalorder %s23, 1
      %p41 = por %p39, %p40
      %p42 = scmp.ne.s32.totalorder %s31, %s32
      %p43 = scmp.eq.s32.totalorder %s23, 0
      %p44 = por %p42, %p43
      %p45 = scmp.ne.s32.totalorder %s31, %s32
      %p46 = scmp.eq.s32.totalorder %s24, 1
      %p47 = por %p45, %p46
      %p49 = scmp.ne.s32.totalorder %s32, %s48
      %p50 = scmp.eq.s32.totalorder %s24, 0
      %p51 = por %p49, %p50
      %s52 = ssub.s32 %s18, %s25
      %p53 = scmp.eq.s32.totalorder %s52, 0
      %s55 = sadd.s32 %s54, 1
      %s56 = scalar_select %p53, %s54, %s55
      %p59 = pneg %p53
      %p60 = scmp.eq.s32.totalorder %s18, 1
      %p61 = por %p59, %p60
      %p62 = scmp.ne.s32.totalorder %s54, %s57
      %p63 = scmp.eq.s32.totalorder %s18, 0
      %p64 = por %p62, %p63
      %p65 = scmp.ne.s32.totalorder %s54, %s57
      %p66 = scmp.eq.s32.totalorder %s23, 1
      %p67 = por %p65, %p66
      %p68 = scmp.ne.s32.totalorder %s57, %s58
      %p69 = scmp.eq.s32.totalorder %s23, 0
      %p70 = por %p68, %p69
      %p71 = scmp.ne.s32.totalorder %s57, %s58
      %p72 = scmp.eq.s32.totalorder %s24, 1
      %p73 = por %p71, %p72
      %p75 = scmp.ne.s32.totalorder %s58, %s74
      %p76 = scmp.eq.s32.totalorder %s24, 0
      %p77 = por %p75, %p76
      %s79 = sadd.s32 %s78, 1
      %p82 = scmp.eq.s32.totalorder %s18, 1
      %p83 = scmp.ne.s32.totalorder %s78, %s80
      %p84 = scmp.eq.s32.totalorder %s18, 0
      %p85 = por %p83, %p84
      %p86 = scmp.ne.s32.totalorder %s78, %s80
      %p87 = scmp.eq.s32.totalorder %s23, 1
      %p88 = por %p86, %p87
      %p89 = scmp.ne.s32.totalorder %s80, %s81
      %p90 = scmp.eq.s32.totalorder %s23, 0
      %p91 = por %p89, %p90
      %p92 = scmp.ne.s32.totalorder %s80, %s81
      %p93 = scmp.eq.s32.totalorder %s24, 1
      %p94 = por %p92, %p93
      %p96 = scmp.ne.s32.totalorder %s81, %s95
      %p97 = scmp.eq.s32.totalorder %s24, 0
      %p98 = por %p96, %p97
      %s99 = ssub.s32 %s18, %s25
      %p100 = scmp.eq.s32.totalorder %s99, 0
      %s102 = sadd.s32 %s101, 1
      %s103 = scalar_select %p100, %s101, %s102
      %p106 = pneg %p100
      %p107 = scmp.eq.s32.totalorder %s18, 1
      %p108 = por %p106, %p107
      %p109 = scmp.ne.s32.totalorder %s101, %s104
      %p110 = scmp.eq.s32.totalorder %s18, 0
      %p111 = por %p109, %p110
      %p112 = scmp.ne.s32.totalorder %s101, %s104
      %p113 = scmp.eq.s32.totalorder %s23, 1
      %p114 = por %p112, %p113
      %p115 = scmp.ne.s32.totalorder %s104, %s105
      %p116 = scmp.eq.s32.totalorder %s23, 0
      %p117 = por %p115, %p116
      %p118 = scmp.ne.s32.totalorder %s104, %s105
      %p119 = scmp.eq.s32.totalorder %s24, 1
      %p120 = por %p118, %p119
      %p122 = scmp.ne.s32.totalorder %s105, %s121
      %p123 = scmp.eq.s32.totalorder %s24, 0
      %p124 = por %p122, %p123
      %p125 = scmp.le.s32.totalorder 1, %s18
      %p126 = scmp.lt.s32.totalorder %s18, 3
      %p127 = pnand %p125, %p126
      %p128 = pneg %p127
      // Predicated region
      $region9: #{tpu_custom_call.1} parent=5 // pred_check
        _
      $region10: #{tpu_custom_call.1} parent=5 // pred_check_branch
        %130 = sbr.rel (%p127) target = $region12
      $region11: #{tpu_custom_call.1} parent=5 // pred_region
        %s131 = ssub.s32 %s18, 1
        // Predicated region
        $region13: #{tpu_custom_call.1} parent=11 // pred_check
          %p132 = pneg %p91
        $region14: #{tpu_custom_call.1} parent=11 // pred_check_branch
          %134 = sbr.rel (%p132) target = $region16
        $region15: #{tpu_custom_call.1} parent=11 // pred_region
          %136 = vsyncadd [#allocation6], 0
          %s137 = sshll.u32 %s2, 4
          %s138 = int_to_ptr.hbm [resolvable:$true] %s137
          %s139 = sshll.u32 [#allocation7], 4
          %s140 = int_to_ptr.vmem [resolvable:$true] %s139
          %145 = dma.hbm_to_vmem [thread:$0]  %s138, 1024, %s140, [#allocation6], 64, 64, 4
        $region16: #{tpu_custom_call.1} parent=11 // pred_fallthru
          _
      $region12: #{tpu_custom_call.1} parent=5 // pred_fallthru
        _
      %p146 = scmp.lt.s32.totalorder %s18, 2
      // Predicated region
      $region17: #{tpu_custom_call.1} parent=5 // pred_check
        %p147 = pneg %p146
      $region18: #{tpu_custom_call.1} parent=5 // pred_check_branch
        %149 = sbr.rel (%p147) target = $region20
      $region19: #{tpu_custom_call.1} parent=5 // pred_region
        // Predicated region
        $region21: #{tpu_custom_call.1} parent=19 // pred_check
          %p150 = pneg %p38
        $region22: #{tpu_custom_call.1} parent=19 // pred_check_branch
          %152 = sbr.rel (%p150) target = $region24
        $region23: #{tpu_custom_call.1} parent=19 // pred_region
          #allocation10 [shape = 'u32[6]{0}', space=smem, size = 0x18, scoped, tag = 'DMA stride descriptor']
          %s153 = sand.u32 %s28, 1
          %s154 = scalar_lea.sflag [#allocation3], %s153
          %s155 = sand.u32 %s28, 1
          %s156 = smul.addr %s155, 128
          %s157 = scalar_lea.vmem [#allocation2], %s156
          %s158 = smul.u32 16, %s18
          %s159 = ssub.s32 25, %s158
          %p160 = scmp.lt.s32.totalorder %s159, 16
          %s161 = scalar_select %p160, %s159, 16
          %s162 = smul.u32 8, %s161
          %s163 = ssub.s32 128, %s162
          %s164 = sshll.u32 %s163, 4
          %165 = vsyncadd %s154, %s164
          %p166 = scmp.ne.s32.totalorder 0, %s162
          %s167 = smul.addr %s158, 4
          %s168 = scalar_lea.hbm %s0, %s167
          %s169 = smul.u32 4, %s161
          %s170 = smul.u32 %s169, 2
          %s172 = sshll.u32 1, 14
          %s173 = sxor.u32 4294967295, %s172
          %s175 = sld [smem:[#allocation0]]
          %s176 = sadd.s32 2, %s175
          %s178 = sshll.u32 7, 26
          %s179 = sxor.u32 4294967295, %s178
          %s180 = sand.u32 0, %s179
          %s181 = sshll.u32 %s176, 26
          %s182 = sor.u32 %s180, %s181
          %s183 = sshll.u32 %s168, 4
          %s184 = int_to_ptr.hbm [resolvable:$true] %s183
          %s185 = sshll.u32 %s157, 4
          %s186 = int_to_ptr.vmem [resolvable:$true] %s185
          %s187 = sshll.u32 %s170, 4
          %192 = sst [smem:[#allocation10]] 1600
          %s193 = scalar_lea.smem [#allocation10], 1
          %194 = sst [smem:[%s193]] 1024
          %s195 = scalar_lea.smem [#allocation10], 2
          %196 = sst [smem:[%s195]] %s161
          %s197 = scalar_lea.smem [#allocation10], 3
          %198 = sst [smem:[%s197]] 64
          %s199 = scalar_lea.smem [#allocation10], 4
          %200 = sst [smem:[%s199]] 64
          %s201 = scalar_lea.smem [#allocation10], 5
          %202 = sst [smem:[%s201]] 4
          %204 = dma.general (%p166), %s184, %s187, %s186, %s154, [#allocation9], [#allocation10], %s182, 0
        $region24: #{tpu_custom_call.1} parent=19 // pred_fallthru
          _
        // Predicated region
        $region25: #{tpu_custom_call.1} parent=19 // pred_check
          %p205 = pneg %p64
        $region26: #{tpu_custom_call.1} parent=19 // pred_check_branch
          %207 = sbr.rel (%p205) target = $region28
        $region27: #{tpu_custom_call.1} parent=19 // pred_region
          %s208 = sand.u32 %s18, 1
          %s209 = scalar_lea.sflag [#allocation6], %s208
          %s210 = sand.u32 %s54, 1
          %s211 = scalar_lea.vmem [#allocation5], %s210
          %213 = vsyncadd %s209, 0
          %s214 = scalar_lea.hbm %s1, %s18
          %s216 = sshll.u32 %s214, 4
          %s217 = int_to_ptr.hbm [resolvable:$true] %s216
          %s218 = sshll.u32 %s211, 4
          %s219 = int_to_ptr.vmem [resolvable:$true] %s218
          %221 = dma.hbm_to_vmem [thread:$0]  %s217, 16, %s219, %s209
        $region28: #{tpu_custom_call.1} parent=19 // pred_fallthru
          _
      $region20: #{tpu_custom_call.1} parent=5 // pred_fallthru
        _
      %p222 = scmp.le.s32.totalorder 1, %s18
      %p223 = scmp.lt.s32.totalorder %s18, 3
      %p224 = pnand %p222, %p223
      %p225 = pneg %p224
      // Predicated region
      $region29: #{tpu_custom_call.1} parent=5 // pred_check
        _
      $region30: #{tpu_custom_call.1} parent=5 // pred_check_branch
        %227 = sbr.rel (%p224) target = $region32
      $region31: #{tpu_custom_call.1} parent=5 // pred_region
        %s228 = ssub.s32 %s18, 1
        %s229 = sand.u32 %s31, 1
        %s230 = scalar_lea.sflag [#allocation3], %s229
        %s231 = sand.u32 %s31, 1
        %s232 = smul.addr %s231, 128
        %s233 = scalar_lea.vmem [#allocation2], %s232
        // Predicated region
        $region33: #{tpu_custom_call.1} parent=31 // pred_check
          %p234 = pneg %p44
        $region34: #{tpu_custom_call.1} parent=31 // pred_check_branch
          %236 = sbr.rel (%p234) target = $region36
        $region35: #{tpu_custom_call.1} parent=31 // pred_region
          %238 = dma.done %s230, 2048
        $region36: #{tpu_custom_call.1} parent=31 // pred_fallthru
          _
        %s239 = sand.u32 %s23, 1
        %s240 = scalar_lea.sflag [#allocation6], %s239
        %s241 = sand.u32 %s57, 1
        %s242 = scalar_lea.vmem [#allocation5], %s241
        // Predicated region
        $region37: #{tpu_custom_call.1} parent=31 // pred_check
          %p243 = pneg %p70
        $region38: #{tpu_custom_call.1} parent=31 // pred_check_branch
          %245 = sbr.rel (%p243) target = $region40
        $region39: #{tpu_custom_call.1} parent=31 // pred_region
          %247 = dma.done %s240, 16
        $region40: #{tpu_custom_call.1} parent=31 // pred_fallthru
          _
        // Predicated region
        $region41: #{tpu_custom_call.1} parent=31 // pred_check
          %p248 = pneg %p91
        $region42: #{tpu_custom_call.1} parent=31 // pred_check_branch
          %250 = sbr.rel (%p248) target = $region44
        $region43: #{tpu_custom_call.1} parent=31 // pred_region
          %252 = dma.done [#allocation6], 1024
        $region44: #{tpu_custom_call.1} parent=31 // pred_fallthru
          _
        %s253 = sand.u32 %s31, 1
        %s254 = scalar_lea.sflag [#allocation3], %s253
        %s255 = sand.u32 %s31, 1
        %s256 = smul.addr %s255, 128
        %s257 = scalar_lea.vmem [#allocation2], %s256
        %p258 = pneg %p44
        %p259 = pneg %p41
        %s260 = sand.u32 %s23, 1
        %s261 = scalar_lea.sflag [#allocation6], %s260
        %s262 = sand.u32 %s57, 1
        %s263 = scalar_lea.vmem [#allocation5], %s262
        %p264 = pneg %p70
        %p265 = pneg %p67
        %p266 = pneg %p91
        %p267 = pneg %p88
        %p268 = pneg %p117
        %p269 = pneg %p114
        %s270 = sand.u32 %s104, 1
        %s271 = scalar_lea.sflag [#allocation4], %s270
        %s272 = sand.u32 %s104, 1
        %s273 = scalar_lea.vmem [#allocation8], %s272
        %s274 = smul.u32 16, %s23
        %s275 = ssub.s32 25, %s274
        %p276 = scmp.lt.s32.totalorder %s275, 16
        %s277 = scalar_select %p276, %s275, 16
        %s278 = smul.u32 8, %s277
        %v279 = vld [vmem:[%s233] sm:$0xf]
        %v280 = vld [vmem:[%s233 + $0x4] sm:$0xf]
        %v281 = vld [vmem:[%s233 + $0x8] sm:$0xf]
        %v282 = vld [vmem:[%s233 + $0xc] sm:$0xf]
        %v283 = vld [vmem:[%s233 + $0x10] sm:$0xf]
        %v284 = vld [vmem:[%s233 + $0x14] sm:$0xf]
        %v285 = vld [vmem:[%s233 + $0x18] sm:$0xf]
        %v286 = vld [vmem:[%s233 + $0x1c] sm:$0xf]
        %v287 = vld [vmem:[%s233 + $0x20] sm:$0xf]
        %v288 = vld [vmem:[%s233 + $0x24] sm:$0xf]
        %v289 = vld [vmem:[%s233 + $0x28] sm:$0xf]
        %v290 = vld [vmem:[%s233 + $0x2c] sm:$0xf]
        %v291 = vld [vmem:[%s233 + $0x30] sm:$0xf]
        %v292 = vld [vmem:[%s233 + $0x34] sm:$0xf]
        %v293 = vld [vmem:[%s233 + $0x38] sm:$0xf]
        %v294 = vld [vmem:[%s233 + $0x3c] sm:$0xf]
        %v295 = vld [vmem:[%s233 + $0x40] sm:$0xf]
        %v296 = vld [vmem:[%s233 + $0x44] sm:$0xf]
        %v297 = vld [vmem:[%s233 + $0x48] sm:$0xf]
        %v298 = vld [vmem:[%s233 + $0x4c] sm:$0xf]
        %v299 = vld [vmem:[%s233 + $0x50] sm:$0xf]
        %v300 = vld [vmem:[%s233 + $0x54] sm:$0xf]
        %v301 = vld [vmem:[%s233 + $0x58] sm:$0xf]
        %v302 = vld [vmem:[%s233 + $0x5c] sm:$0xf]
        %v303 = vld [vmem:[%s233 + $0x60] sm:$0xf]
        %v304 = vld [vmem:[%s233 + $0x64] sm:$0xf]
        %v305 = vld [vmem:[%s233 + $0x68] sm:$0xf]
        %v306 = vld [vmem:[%s233 + $0x6c] sm:$0xf]
        %v307 = vld [vmem:[%s233 + $0x70] sm:$0xf]
        %v308 = vld [vmem:[%s233 + $0x74] sm:$0xf]
        %v309 = vld [vmem:[%s233 + $0x78] sm:$0xf]
        %v310 = vld [vmem:[%s233 + $0x7c] sm:$0xf]
        %v311 = vld [vmem:[#allocation7] sm:$0xf]
        %v312 = vld [vmem:[#allocation7 + $0x4] sm:$0xf]
        %v313 = vld [vmem:[#allocation7 + $0x8] sm:$0xf]
        %v314 = vld [vmem:[#allocation7 + $0xc] sm:$0xf]
        %v315 = vld [vmem:[#allocation7 + $0x10] sm:$0xf]
        %v316 = vld [vmem:[#allocation7 + $0x14] sm:$0xf]
        %v317 = vld [vmem:[#allocation7 + $0x18] sm:$0xf]
        %v318 = vld [vmem:[#allocation7 + $0x1c] sm:$0xf]
        %v319 = vld [vmem:[#allocation7 + $0x20] sm:$0xf]
        %v320 = vld [vmem:[#allocation7 + $0x24] sm:$0xf]
        %v321 = vld [vmem:[#allocation7 + $0x28] sm:$0xf]
        %v322 = vld [vmem:[#allocation7 + $0x2c] sm:$0xf]
        %v323 = vld [vmem:[#allocation7 + $0x30] sm:$0xf]
        %v324 = vld [vmem:[#allocation7 + $0x34] sm:$0xf]
        %v325 = vld [vmem:[#allocation7 + $0x38] sm:$0xf]
        %v326 = vld [vmem:[#allocation7 + $0x3c] sm:$0xf]
        %v359 = vunpack.c.l.b16 %v279
        %v360 = vunpack.c.l.b16 %v280
        %v361 = vunpack.c.l.b16 %v281
        %v362 = vunpack.c.l.b16 %v282
        %v363 = vunpack.c.l.b16 %v283
        %v364 = vunpack.c.l.b16 %v284
        %v365 = vunpack.c.l.b16 %v285
        %v366 = vunpack.c.l.b16 %v286
        %v367 = vunpack.c.l.b16 %v287
        %v368 = vunpack.c.l.b16 %v288
        %v369 = vunpack.c.l.b16 %v289
        %v370 = vunpack.c.l.b16 %v290
        %v371 = vunpack.c.l.b16 %v291
        %v372 = vunpack.c.l.b16 %v292
        %v373 = vunpack.c.l.b16 %v293
        %v374 = vunpack.c.l.b16 %v294
        %v375 = vunpack.c.l.b16 %v295
        %v376 = vunpack.c.l.b16 %v296
        %v377 = vunpack.c.l.b16 %v297
        %v378 = vunpack.c.l.b16 %v298
        %v379 = vunpack.c.l.b16 %v299
        %v380 = vunpack.c.l.b16 %v300
        %v381 = vunpack.c.l.b16 %v301
        %v382 = vunpack.c.l.b16 %v302
        %v383 = vunpack.c.l.b16 %v303
        %v384 = vunpack.c.l.b16 %v304
        %v385 = vunpack.c.l.b16 %v305
        %v386 = vunpack.c.l.b16 %v306
        %v387 = vunpack.c.l.b16 %v307
        %v388 = vunpack.c.l.b16 %v308
        %v389 = vunpack.c.l.b16 %v309
        %v390 = vunpack.c.l.b16 %v310
        %v391 = vpack.c.b16 %v360, %v359
        %v392 = vpack.c.b16 %v362, %v361
        %v393 = vpack.c.b16 %v364, %v363
        %v394 = vpack.c.b16 %v366, %v365
        %v395 = vpack.c.b16 %v368, %v367
        %v396 = vpack.c.b16 %v370, %v369
        %v397 = vpack.c.b16 %v372, %v371
        %v398 = vpack.c.b16 %v374, %v373
        %v399 = vpack.c.b16 %v376, %v375
        %v400 = vpack.c.b16 %v378, %v377
        %v401 = vpack.c.b16 %v380, %v379
        %v402 = vpack.c.b16 %v382, %v381
        %v403 = vpack.c.b16 %v384, %v383
        %v404 = vpack.c.b16 %v386, %v385
        %v405 = vpack.c.b16 %v388, %v387
        %v406 = vpack.c.b16 %v390, %v389
        %v439 = vunpack.c.l.b16 %v311
        %v440 = vunpack.c.l.b16 %v312
        %v441 = vunpack.c.l.b16 %v313
        %v442 = vunpack.c.l.b16 %v314
        %v443 = vunpack.c.l.b16 %v315
        %v444 = vunpack.c.l.b16 %v316
        %v445 = vunpack.c.l.b16 %v317
        %v446 = vunpack.c.l.b16 %v318
        %v447 = vunpack.c.l.b16 %v319
        %v448 = vunpack.c.l.b16 %v320
        %v449 = vunpack.c.l.b16 %v321
        %v450 = vunpack.c.l.b16 %v322
        %v451 = vunpack.c.l.b16 %v323
        %v452 = vunpack.c.l.b16 %v324
        %v453 = vunpack.c.l.b16 %v325
        %v454 = vunpack.c.l.b16 %v326
        %v455 = vpack.c.b16 %v440, %v439
        %v456 = vpack.c.b16 %v442, %v441
        %v457 = vpack.c.b16 %v444, %v443
        %v458 = vpack.c.b16 %v446, %v445
        %v459 = vpack.c.b16 %v448, %v447
        %v460 = vpack.c.b16 %v450, %v449
        %v461 = vpack.c.b16 %v452, %v451
        %v462 = vpack.c.b16 %v454, %v453
        %471 = vmatpush.bf16.msra.mxu0 %v462
        %472 = vmatpush.bf16.msra.mxu0 %v461
        %473 = vmatpush.bf16.msra.mxu0 %v460
        %474 = vmatpush.bf16.msra.mxu0 %v459
        %475 = vmatpush.bf16.msra.mxu0 %v458
        %476 = vmatpush.bf16.msra.mxu0 %v457
        %477 = vmatpush.bf16.msra.mxu0 %v456
        %478 = vmatpush.bf16.msra.mxu0 %v455
        %479 = vmatmul.bf16.gmra.mxu0 %v391
        %v480 = vpop.f32.mrf.mxu0
        %v481 = vadd.f32 0.0, %v480
        %v482 = vpop.f32.mrf.mxu0
        %v483 = vadd.f32 0.0, %v482
        %484 = vmatmul.bf16.gmra.mxu0 %v392
        %v485 = vpop.f32.mrf.mxu0
        %v486 = vadd.f32 0.0, %v485
        %v487 = vpop.f32.mrf.mxu0
        %v488 = vadd.f32 0.0, %v487
        %489 = vmatmul.bf16.gmra.mxu0 %v393
        %v490 = vpop.f32.mrf.mxu0
        %v491 = vadd.f32 0.0, %v490
        %v492 = vpop.f32.mrf.mxu0
        %v493 = vadd.f32 0.0, %v492
        %494 = vmatmul.bf16.gmra.mxu0 %v394
        %v495 = vpop.f32.mrf.mxu0
        %v496 = vadd.f32 0.0, %v495
        %v497 = vpop.f32.mrf.mxu0
        %v498 = vadd.f32 0.0, %v497
        %499 = vmatmul.bf16.gmra.mxu0 %v395
        %v500 = vpop.f32.mrf.mxu0
        %v501 = vadd.f32 0.0, %v500
        %v502 = vpop.f32.mrf.mxu0
        %v503 = vadd.f32 0.0, %v502
        %504 = vmatmul.bf16.gmra.mxu0 %v396
        %v505 = vpop.f32.mrf.mxu0
        %v506 = vadd.f32 0.0, %v505
        %v507 = vpop.f32.mrf.mxu0
        %v508 = vadd.f32 0.0, %v507
        %509 = vmatmul.bf16.gmra.mxu0 %v397
        %v510 = vpop.f32.mrf.mxu0
        %v511 = vadd.f32 0.0, %v510
        %v512 = vpop.f32.mrf.mxu0
        %v513 = vadd.f32 0.0, %v512
        %514 = vmatmul.bf16.gmra.mxu0 %v398
        %v515 = vpop.f32.mrf.mxu0
        %v516 = vadd.f32 0.0, %v515
        %v517 = vpop.f32.mrf.mxu0
        %v518 = vadd.f32 0.0, %v517
        %519 = vmatmul.bf16.gmra.mxu0 %v399
        %v520 = vpop.f32.mrf.mxu0
        %v521 = vadd.f32 0.0, %v520
        %v522 = vpop.f32.mrf.mxu0
        %v523 = vadd.f32 0.0, %v522
        %524 = vmatmul.bf16.gmra.mxu0 %v400
        %v525 = vpop.f32.mrf.mxu0
        %v526 = vadd.f32 0.0, %v525
        %v527 = vpop.f32.mrf.mxu0
        %v528 = vadd.f32 0.0, %v527
        %529 = vmatmul.bf16.gmra.mxu0 %v401
        %v530 = vpop.f32.mrf.mxu0
        %v531 = vadd.f32 0.0, %v530
        %v532 = vpop.f32.mrf.mxu0
        %v533 = vadd.f32 0.0, %v532
        %534 = vmatmul.bf16.gmra.mxu0 %v402
        %v535 = vpop.f32.mrf.mxu0
        %v536 = vadd.f32 0.0, %v535
        %v537 = vpop.f32.mrf.mxu0
        %v538 = vadd.f32 0.0, %v537
        %539 = vmatmul.bf16.gmra.mxu0 %v403
        %v540 = vpop.f32.mrf.mxu0
        %v541 = vadd.f32 0.0, %v540
        %v542 = vpop.f32.mrf.mxu0
        %v543 = vadd.f32 0.0, %v542
        %544 = vmatmul.bf16.gmra.mxu0 %v404
        %v545 = vpop.f32.mrf.mxu0
        %v546 = vadd.f32 0.0, %v545
        %v547 = vpop.f32.mrf.mxu0
        %v548 = vadd.f32 0.0, %v547
        %549 = vmatmul.bf16.gmra.mxu0 %v405
        %v550 = vpop.f32.mrf.mxu0
        %v551 = vadd.f32 0.0, %v550
        %v552 = vpop.f32.mrf.mxu0
        %v553 = vadd.f32 0.0, %v552
        %554 = vmatmul.bf16.gmra.mxu0 %v406
        %v555 = vpop.f32.mrf.mxu0
        %v556 = vadd.f32 0.0, %v555
        %v557 = vpop.f32.mrf.mxu0
        %v558 = vadd.f32 0.0, %v557
        %559 = vdwg.mxu0
        %v560 = vmul.f32 %v481, %v521
        %v561 = vmul.f32 %v483, %v523
        %v562 = vmul.f32 %v486, %v526
        %v563 = vmul.f32 %v488, %v528
        %v564 = vmul.f32 %v491, %v531
        %v565 = vmul.f32 %v493, %v533
        %v566 = vmul.f32 %v496, %v536
        %v567 = vmul.f32 %v498, %v538
        %v568 = vmul.f32 %v501, %v541
        %v569 = vmul.f32 %v503, %v543
        %v570 = vmul.f32 %v506, %v546
        %v571 = vmul.f32 %v508, %v548
        %v572 = vmul.f32 %v511, %v551
        %v573 = vmul.f32 %v513, %v553
        %v574 = vmul.f32 %v516, %v556
        %v575 = vmul.f32 %v518, %v558
        %576 = vadd.xlane.f32.xlu0 %v560
        %v577 = vpop.xlane.xlu0 %576
        %578 = vadd.xlane.f32.xlu0 %v561
        %v579 = vpop.xlane.xlu0 %578
        %580 = vadd.xlane.f32.xlu0 %v562
        %v581 = vpop.xlane.xlu0 %580
        %582 = vadd.xlane.f32.xlu0 %v563
        %v583 = vpop.xlane.xlu0 %582
        %584 = vadd.xlane.f32.xlu0 %v564
        %v585 = vpop.xlane.xlu0 %584
        %586 = vadd.xlane.f32.xlu0 %v565
        %v587 = vpop.xlane.xlu0 %586
        %588 = vadd.xlane.f32.xlu0 %v566
        %v589 = vpop.xlane.xlu0 %588
        %590 = vadd.xlane.f32.xlu0 %v567
        %v591 = vpop.xlane.xlu0 %590
        %592 = vadd.xlane.f32.xlu0 %v568
        %v593 = vpop.xlane.xlu0 %592
        %594 = vadd.xlane.f32.xlu0 %v569
        %v595 = vpop.xlane.xlu0 %594
        %596 = vadd.xlane.f32.xlu0 %v570
        %v597 = vpop.xlane.xlu0 %596
        %598 = vadd.xlane.f32.xlu0 %v571
        %v599 = vpop.xlane.xlu0 %598
        %600 = vadd.xlane.f32.xlu0 %v572
        %v601 = vpop.xlane.xlu0 %600
        %602 = vadd.xlane.f32.xlu0 %v573
        %v603 = vpop.xlane.xlu0 %602
        %604 = vadd.xlane.f32.xlu0 %v574
        %v605 = vpop.xlane.xlu0 %604
        %606 = vadd.xlane.f32.xlu0 %v575
        %v607 = vpop.xlane.xlu0 %606
        %v608 = vld [vmem:[%s242] sm:$0x1]
        %v609 = vrcp.pop %v608
        %v611 = vperm.slane %v609, 0
        %v612 = vlaneseq
        %v613 = vshrl.u32 %v612, 7
        %615 = vset.pattern.permute.xlu0 %v613
        %616 = vperm.xlu0 %615, %v611
        %v617 = vpop.permute.xlu0 %616
        %v618 = vlaneseq
        %v619 = vshrl.u32 %v618, 7
        %v620 = vadd.s32 %v619, 8
        %621 = vset.pattern.permute.xlu0 %v620
        %622 = vperm.xlu0 %621, %v611
        %v623 = vpop.permute.xlu0 %622
        %v624 = vlaneseq
        %v625 = vshrl.u32 %v624, 7
        %v626 = vadd.s32 %v625, 16
        %627 = vset.pattern.permute.xlu0 %v626
        %628 = vperm.xlu0 %627, %v611
        %v629 = vpop.permute.xlu0 %628
        %v630 = vlaneseq
        %v631 = vshrl.u32 %v630, 7
        %v632 = vadd.s32 %v631, 24
        %633 = vset.pattern.permute.xlu0 %v632
        %634 = vperm.xlu0 %633, %v611
        %v635 = vpop.permute.xlu0 %634
        %v636 = vlaneseq
        %v637 = vshrl.u32 %v636, 7
        %v638 = vadd.s32 %v637, 32
        %639 = vset.pattern.permute.xlu0 %v638
        %640 = vperm.xlu0 %639, %v611
        %v641 = vpop.permute.xlu0 %640
        %v642 = vlaneseq
        %v643 = vshrl.u32 %v642, 7
        %v644 = vadd.s32 %v643, 40
        %645 = vset.pattern.permute.xlu0 %v644
        %646 = vperm.xlu0 %645, %v611
        %v647 = vpop.permute.xlu0 %646
        %v648 = vlaneseq
        %v649 = vshrl.u32 %v648, 7
        %v650 = vadd.s32 %v649, 48
        %651 = vset.pattern.permute.xlu0 %v650
        %652 = vperm.xlu0 %651, %v611
        %v653 = vpop.permute.xlu0 %652
        %v654 = vlaneseq
        %v655 = vshrl.u32 %v654, 7
        %v656 = vadd.s32 %v655, 56
        %657 = vset.pattern.permute.xlu0 %v656
        %658 = vperm.xlu0 %657, %v611
        %v659 = vpop.permute.xlu0 %658
        %v660 = vlaneseq
        %v661 = vshrl.u32 %v660, 7
        %v662 = vadd.s32 %v661, 64
        %663 = vset.pattern.permute.xlu0 %v662
        %664 = vperm.xlu0 %663, %v611
        %v665 = vpop.permute.xlu0 %664
        %v666 = vlaneseq
        %v667 = vshrl.u32 %v666, 7
        %v668 = vadd.s32 %v667, 72
        %669 = vset.pattern.permute.xlu0 %v668
        %670 = vperm.xlu0 %669, %v611
        %v671 = vpop.permute.xlu0 %670
        %v672 = vlaneseq
        %v673 = vshrl.u32 %v672, 7
        %v674 = vadd.s32 %v673, 80
        %675 = vset.pattern.permute.xlu0 %v674
        %676 = vperm.xlu0 %675, %v611
        %v677 = vpop.permute.xlu0 %676
        %v678 = vlaneseq
        %v679 = vshrl.u32 %v678, 7
        %v680 = vadd.s32 %v679, 88
        %681 = vset.pattern.permute.xlu0 %v680
        %682 = vperm.xlu0 %681, %v611
        %v683 = vpop.permute.xlu0 %682
        %v684 = vlaneseq
        %v685 = vshrl.u32 %v684, 7
        %v686 = vadd.s32 %v685, 96
        %687 = vset.pattern.permute.xlu0 %v686
        %688 = vperm.xlu0 %687, %v611
        %v689 = vpop.permute.xlu0 %688
        %v690 = vlaneseq
        %v691 = vshrl.u32 %v690, 7
        %v692 = vadd.s32 %v691, 104
        %693 = vset.pattern.permute.xlu0 %v692
        %694 = vperm.xlu0 %693, %v611
        %v695 = vpop.permute.xlu0 %694
        %v696 = vlaneseq
        %v697 = vshrl.u32 %v696, 7
        %v698 = vadd.s32 %v697, 112
        %699 = vset.pattern.permute.xlu0 %v698
        %700 = vperm.xlu0 %699, %v611
        %v701 = vpop.permute.xlu0 %700
        %v702 = vlaneseq
        %v703 = vshrl.u32 %v702, 7
        %v704 = vadd.s32 %v703, 120
        %705 = vset.pattern.permute.xlu0 %v704
        %706 = vperm.xlu0 %705, %v611
        %v707 = vpop.permute.xlu0 %706
        %v724 = vmul.f32 %v577, %v617
        %v725 = vmul.f32 %v579, %v623
        %v726 = vmul.f32 %v581, %v629
        %v727 = vmul.f32 %v583, %v635
        %v728 = vmul.f32 %v585, %v641
        %v729 = vmul.f32 %v587, %v647
        %v730 = vmul.f32 %v589, %v653
        %v731 = vmul.f32 %v591, %v659
        %v732 = vmul.f32 %v593, %v665
        %v733 = vmul.f32 %v595, %v671
        %v734 = vmul.f32 %v597, %v677
        %v735 = vmul.f32 %v599, %v683
        %v736 = vmul.f32 %v601, %v689
        %v737 = vmul.f32 %v603, %v695
        %v738 = vmul.f32 %v605, %v701
        %v739 = vmul.f32 %v607, %v707
        %756 = vset.pattern.permute.xlu0 0
        %757 = vperm.xlu0 %756, %v724
        %v758 = vpop.permute.xlu0 %757
        %759 = vset.pattern.permute.xlu0 0
        %760 = vperm.xlu0 %759, %v725
        %v761 = vpop.permute.xlu0 %760
        %762 = vset.pattern.permute.xlu0 0
        %763 = vperm.xlu0 %762, %v726
        %v764 = vpop.permute.xlu0 %763
        %765 = vset.pattern.permute.xlu0 0
        %766 = vperm.xlu0 %765, %v727
        %v767 = vpop.permute.xlu0 %766
        %768 = vset.pattern.permute.xlu0 0
        %769 = vperm.xlu0 %768, %v728
        %v770 = vpop.permute.xlu0 %769
        %771 = vset.pattern.permute.xlu0 0
        %772 = vperm.xlu0 %771, %v729
        %v773 = vpop.permute.xlu0 %772
        %774 = vset.pattern.permute.xlu0 0
        %775 = vperm.xlu0 %774, %v730
        %v776 = vpop.permute.xlu0 %775
        %777 = vset.pattern.permute.xlu0 0
        %778 = vperm.xlu0 %777, %v731
        %v779 = vpop.permute.xlu0 %778
        %780 = vset.pattern.permute.xlu0 0
        %781 = vperm.xlu0 %780, %v732
        %v782 = vpop.permute.xlu0 %781
        %783 = vset.pattern.permute.xlu0 0
        %784 = vperm.xlu0 %783, %v733
        %v785 = vpop.permute.xlu0 %784
        %786 = vset.pattern.permute.xlu0 0
        %787 = vperm.xlu0 %786, %v734
        %v788 = vpop.permute.xlu0 %787
        %789 = vset.pattern.permute.xlu0 0
        %790 = vperm.xlu0 %789, %v735
        %v791 = vpop.permute.xlu0 %790
        %792 = vset.pattern.permute.xlu0 0
        %793 = vperm.xlu0 %792, %v736
        %v794 = vpop.permute.xlu0 %793
        %795 = vset.pattern.permute.xlu0 0
        %796 = vperm.xlu0 %795, %v737
        %v797 = vpop.permute.xlu0 %796
        %798 = vset.pattern.permute.xlu0 0
        %799 = vperm.xlu0 %798, %v738
        %v800 = vpop.permute.xlu0 %799
        %801 = vset.pattern.permute.xlu0 0
        %802 = vperm.xlu0 %801, %v739
        %v803 = vpop.permute.xlu0 %802
        %v804 = vlaneseq
        %v805 = vand.u32 %v804, 127
        %v806 = vperm.slane %v758, %v805
        %v807 = vadd.s32 %v805, 4294967288
        %v808 = vperm.slane %v761, %v807
        %vm809 = vcmask 130112
        %v810 = vsel %vm809, %v808, %v806
        %v811 = vadd.s32 %v805, 4294967280
        %v812 = vperm.slane %v764, %v811
        %vm813 = vcmask 195712
        %v814 = vsel %vm813, %v812, %v810
        %v815 = vadd.s32 %v805, 4294967272
        %v816 = vperm.slane %v767, %v815
        %vm817 = vcmask 261312
        %v818 = vsel %vm817, %v816, %v814
        %v819 = vadd.s32 %v805, 4294967264
        %v820 = vperm.slane %v770, %v819
        %vm821 = vcmask 326912
        %v822 = vsel %vm821, %v820, %v818
        %v823 = vadd.s32 %v805, 4294967256
        %v824 = vperm.slane %v773, %v823
        %vm825 = vcmask 392512
        %v826 = vsel %vm825, %v824, %v822
        %v827 = vadd.s32 %v805, 4294967248
        %v828 = vperm.slane %v776, %v827
        %vm829 = vcmask 458112
        %v830 = vsel %vm829, %v828, %v826
        %v831 = vadd.s32 %v805, 4294967240
        %v832 = vperm.slane %v779, %v831
        %vm833 = vcmask 523712
        %v834 = vsel %vm833, %v832, %v830
        %v835 = vadd.s32 %v805, 4294967232
        %v836 = vperm.slane %v782, %v835
        %vm837 = vcmask 589312
        %v838 = vsel %vm837, %v836, %v834
        %v839 = vadd.s32 %v805, 4294967224
        %v840 = vperm.slane %v785, %v839
        %vm841 = vcmask 654912
        %v842 = vsel %vm841, %v840, %v838
        %v843 = vadd.s32 %v805, 4294967216
        %v844 = vperm.slane %v788, %v843
        %vm845 = vcmask 720512
        %v846 = vsel %vm845, %v844, %v842
        %v847 = vadd.s32 %v805, 4294967208
        %v848 = vperm.slane %v791, %v847
        %vm849 = vcmask 786112
        %v850 = vsel %vm849, %v848, %v846
        %v851 = vadd.s32 %v805, 4294967200
        %v852 = vperm.slane %v794, %v851
        %vm853 = vcmask 851712
        %v854 = vsel %vm853, %v852, %v850
        %v855 = vadd.s32 %v805, 4294967192
        %v856 = vperm.slane %v797, %v855
        %vm857 = vcmask 917312
        %v858 = vsel %vm857, %v856, %v854
        %v859 = vadd.s32 %v805, 4294967184
        %v860 = vperm.slane %v800, %v859
        %vm861 = vcmask 982912
        %v862 = vsel %vm861, %v860, %v858
        %v863 = vadd.s32 %v805, 4294967176
        %v864 = vperm.slane %v803, %v863
        %vm865 = vcmask 1048512
        %v866 = vsel %vm865, %v864, %v862
        %868 = vst [vmem:[%s273] sm:$0x1] %v866
        %s869 = sand.u32 %s104, 1
        %s870 = scalar_lea.sflag [#allocation4], %s869
        %s871 = sand.u32 %s104, 1
        %s872 = scalar_lea.vmem [#allocation8], %s871
        // Predicated region
        $region45: #{tpu_custom_call.1} parent=31 // pred_check
          %p873 = pneg %p114
        $region46: #{tpu_custom_call.1} parent=31 // pred_check_branch
          %875 = sbr.rel (%p873) target = $region48
        $region47: #{tpu_custom_call.1} parent=31 // pred_region
          %877 = vsyncadd %s870, 0
          %s878 = scalar_lea.hbm %s3, %s23
          %s880 = sshll.u32 %s872, 4
          %s881 = int_to_ptr.vmem [resolvable:$true] %s880
          %s882 = sshll.u32 %s878, 4
          %s883 = int_to_ptr.hbm [resolvable:$true] %s882
          %885 = dma.vmem_to_hbm [thread:$0]  %s881, 16, %s883, %s870
        $region48: #{tpu_custom_call.1} parent=31 // pred_fallthru
          _
      $region32: #{tpu_custom_call.1} parent=5 // pred_fallthru
        _
      %p886 = scmp.le.s32.totalorder 2, %s18
      // Predicated region
      $region49: #{tpu_custom_call.1} parent=5 // pred_check
        %p887 = pneg %p886
      $region50: #{tpu_custom_call.1} parent=5 // pred_check_branch
        %889 = sbr.rel (%p887) target = $region52
      $region51: #{tpu_custom_call.1} parent=5 // pred_region
        %s890 = ssub.s32 %s18, 2
        // Predicated region
        $region53: #{tpu_custom_call.1} parent=51 // pred_check
          %p891 = pneg %p120
        $region54: #{tpu_custom_call.1} parent=51 // pred_check_branch
          %893 = sbr.rel (%p891) target = $region56
        $region55: #{tpu_custom_call.1} parent=51 // pred_region
          %s894 = sand.u32 %s105, 1
          %s895 = scalar_lea.sflag [#allocation4], %s894
          %s896 = sand.u32 %s105, 1
          %s897 = scalar_lea.vmem [#allocation8], %s896
          %899 = dma.done %s895, 16
        $region56: #{tpu_custom_call.1} parent=51 // pred_fallthru
          _
      $region52: #{tpu_custom_call.1} parent=5 // pred_fallthru
        _
    $region6: #{tpu_custom_call.1} parent=1 // loop_footer
      %s22 = sadd.s32 1, %s18
    $region7: #{tpu_custom_call.1} parent=1 // loop_footer_branch
      %17 = sbr.rel target = $region3
    $region8: #{tpu_custom_call.1} parent=1 // loop_exit
      _
    %900 = vsyncpa [#allocation3], 1
    %s901 = scalar_lea.sflag [#allocation3], 1
    %902 = vsyncpa %s901, 1
    %903 = vsyncpa [#allocation6], 1
    %s904 = scalar_lea.sflag [#allocation6], 1
    %905 = vsyncpa %s904, 1
    %906 = vsyncpa [#allocation4], 1
    %s907 = scalar_lea.sflag [#allocation4], 1
    %908 = vsyncpa %s907, 1

</llo_original>
